<compile_context>
chip_gen: v7x
topology: tpu7x:2x2x1
jax: 0.10.0
libtpu: 0.0.40
codegen_flags: <defaults>
</compile_context>

<pallas_src>
import math
import jax
import jax.numpy as jnp
from jax.experimental import pallas as pl
from jax.experimental.pallas import tpu as pltpu


def _round_up(x, m):
    return (x + m - 1) // m * m


# ----------------------------- Pallas kernels ------------------------------

def _conv_gdn_kernel(p_ref, w_ref, b_ref, g_ref, beta_ref, o_ref):
    # 5x5/s2 conv tile as an MXU matmul over im2col patches (bf16 in, f32 acc).
    y = jnp.dot(p_ref[...], w_ref[...], preferred_element_type=jnp.float32)
    y = y + b_ref[...]
    # GDN: denom[i] = beta[i] + sum_j gamma[i, j] * y[j]^2 ; out = y*rsqrt(denom)
    # (y^2 term and the denom matmul kept in f32 for precision.)
    denom = beta_ref[...] + jnp.dot(y * y, g_ref[...],
                                    preferred_element_type=jnp.float32)
    o_ref[...] = y * jax.lax.rsqrt(denom)


def _conv_kernel(p_ref, w_ref, b_ref, o_ref):
    y = jnp.dot(p_ref[...], w_ref[...], preferred_element_type=jnp.float32)
    o_ref[...] = y + b_ref[...]


def _conv_layer_pallas(patches, wmat, bias2d, gamma_t=None, beta2d=None, *, tm):
    """patches: (Mp, Kp) bf16; wmat: (Kp, Cp) bf16; others f32 (1/Cp, Cp)."""
    Mp, Kp = patches.shape
    Cp = wmat.shape[1]
    grid = (Mp // tm,)

    p_spec = pl.BlockSpec((tm, Kp), lambda i: (i, 0))
    w_spec = pl.BlockSpec((Kp, Cp), lambda i: (0, 0))
    v_spec = pl.BlockSpec((1, Cp), lambda i: (0, 0))
    g_spec = pl.BlockSpec((Cp, Cp), lambda i: (0, 0))
    o_spec = pl.BlockSpec((tm, Cp), lambda i: (i, 0))

    cp = pltpu.CompilerParams(
        dimension_semantics=("parallel",),          # megacore-shardable M axis
        vmem_limit_bytes=48 * 1024 * 1024,          # explicit, fits v7x 64 MiB
    )

    if gamma_t is not None:
        return pl.pallas_call(
            _conv_gdn_kernel,
            out_shape=jax.ShapeDtypeStruct((Mp, Cp), jnp.float32),
            grid=grid,
            in_specs=[p_spec, w_spec, v_spec, g_spec, v_spec],
            out_specs=o_spec,
            compiler_params=cp,
        )(patches, wmat, bias2d, gamma_t, beta2d)

    return pl.pallas_call(
        _conv_kernel,
        out_shape=jax.ShapeDtypeStruct((Mp, Cp), jnp.float32),
        grid=grid,
        in_specs=[p_spec, w_spec, v_spec],
        out_specs=o_spec,
        compiler_params=cp,
    )(patches, wmat, bias2d)


# ------------------------------- JAX glue ----------------------------------

def im2col_s2k5p2(x_nhwc):
    """5x5 kernel, stride 2, padding 2 -> patches (N*Ho*Wo, 25*C)."""
    N, H, W, C = x_nhwc.shape
    k, s, p = 5, 2, 2
    Ho = (H + 2 * p - k) // s + 1
    Wo = (W + 2 * p - k) // s + 1
    xp = jnp.pad(x_nhwc, ((0, 0), (p, p), (p, p), (0, 0)))
    cols = []
    for kh in range(k):
        for kw in range(k):
            cols.append(xp[:, kh:kh + s * Ho:s, kw:kw + s * Wo:s, :])
    patches = jnp.stack(cols, axis=3)  # (N, Ho, Wo, 25, C)
    return patches.reshape(N * Ho * Wo, k * k * C), (N, Ho, Wo)


def xavier_normal(key, shape, gain):
    # PyTorch conv weight (Cout, Cin, kh, kw): fan_in=Cin*kh*kw, fan_out=Cout*kh*kw
    fan_in = shape[1] * shape[2] * shape[3]
    fan_out = shape[0] * shape[2] * shape[3]
    std = gain * math.sqrt(2.0 / (fan_in + fan_out))
    return std * jax.random.normal(key, shape, dtype=jnp.float32)


def init_params(key, in_ch, out_ch):
    keys = jax.random.split(key, 4)
    gains = [math.sqrt(2.0), math.sqrt(2.0), math.sqrt(2.0),
             math.sqrt(2.0 * (in_ch + out_ch) / (2.0 * in_ch))]
    chans = [(in_ch, in_ch), (in_ch, in_ch), (in_ch, in_ch), (in_ch, out_ch)]
    params = {}
    for i, (kk, g, (ci, co)) in enumerate(zip(keys, gains, chans)):
        w = xavier_normal(kk, (co, ci, 5, 5), g)
        b = jnp.full((co,), 0.01, dtype=jnp.float32)
        params[f"l{i + 1}"] = (w, b)
    # GDN effective init: beta = 1.0, gamma = 0.1 * I
    for i in range(3):
        params[f"gdn{i + 1}"] = (
            jnp.ones((in_ch,), dtype=jnp.float32),
            0.1 * jnp.eye(in_ch, dtype=jnp.float32),
        )
    return params


def temporal_prior_encoder(x_nchw, params, *, tm_max=512):
    x = jnp.transpose(x_nchw, (0, 2, 3, 1)).astype(jnp.float32)  # NHWC once
    for i in range(1, 5):
        w, b = params[f"l{i}"]
        co, ci = int(w.shape[0]), int(w.shape[1])
        K = 25 * ci
        Kp = _round_up(K, 128)                  # MXU-aligned contraction dim
        Cp = _round_up(max(co, 128), 128)       # lane-dense output channels

        # Weight as (K, Cout) matching im2col (kh, kw, ci) ordering; pad + bf16.
        wmat = jnp.transpose(w, (2, 3, 1, 0)).reshape(K, co)
        wmat = jnp.pad(wmat, ((0, Kp - K), (0, Cp - co))).astype(jnp.bfloat16)
        bias2d = jnp.pad(b, (0, Cp - co)).reshape(1, Cp).astype(jnp.float32)

        # im2col on bf16 activations (halves HBM traffic of the 25x blow-up).
        patches, (N, Ho, Wo) = im2col_s2k5p2(x.astype(jnp.bfloat16))
        M = N * Ho * Wo
        tm = min(tm_max, _round_up(M, 16))      # multiple of 16 (bf16 sublanes)
        Mp = _round_up(M, tm)
        patches = jnp.pad(patches, ((0, Mp - M), (0, Kp - K)))

        if i < 4:
            beta, gamma = params[f"gdn{i}"]
            gamma_t = jnp.pad(jnp.transpose(gamma),
                              ((0, Cp - co), (0, Cp - co))).astype(jnp.float32)
            # Pad beta with 1.0 so padded lanes keep a positive denominator.
            beta2d = jnp.concatenate(
                [beta.astype(jnp.float32),
                 jnp.ones((Cp - co,), jnp.float32)]).reshape(1, Cp)
            y = _conv_layer_pallas(patches, wmat, bias2d, gamma_t, beta2d, tm=tm)
        else:
            y = _conv_layer_pallas(patches, wmat, bias2d, tm=tm)

        x = y[:M, :co].reshape(N, Ho, Wo, co)   # drop M/Cout padding
    return jnp.transpose(x, (0, 3, 1, 2))       # back to NCHW


# --------------------------------- main -------------------------------------

if __name__ == "__main__":
    key = jax.random.PRNGKey(0)
    kx, kp = jax.random.split(key)

    in_ch, out_ch = 8, 16
    N, H, W = 2, 16, 16

    x = jax.random.normal(kx, (N, in_ch, H, W), dtype=jnp.float32)
    params = init_params(kp, in_ch, out_ch)

    fwd = jax.jit(temporal_prior_encoder)       # fuse launches / transposes
    out = jax.block_until_ready(fwd(x, params))

    assert out.shape == (N, out_ch, H // 16, W // 16), out.shape
    assert bool(jnp.all(jnp.isfinite(out)))
    print("KERNEL_OK")
</pallas_src>

<mosaic_0001>
module attributes {stable_mosaic.version = 11 : i64} {
  func.func @_conv_gdn_kernel(%arg0: i32, %arg1: memref<128x256xbf16, #tpu.memory_space<vmem>>, %arg2: memref<256x128xbf16, #tpu.memory_space<vmem>>, %arg3: memref<1x128xf32, #tpu.memory_space<vmem>>, %arg4: memref<128x128xf32, #tpu.memory_space<vmem>>, %arg5: memref<1x128xf32, #tpu.memory_space<vmem>>, %arg6: memref<128x128xf32, #tpu.memory_space<vmem>>) attributes {dimension_semantics = [#tpu.dimension_semantics<parallel>], iteration_bounds = array<i64: 1>, scalar_prefetch = 0 : i64, scratch_operands = 0 : i64, tpu.core_type = #tpu.core_type<tc>, window_params = [{transform_indices = @transform_0, window_bounds = array<i64: 128, 256>}, {pipeline_mode = #tpu.pipeline_mode<synchronous>, transform_indices = @transform_1, window_bounds = array<i64: 256, 128>}, {pipeline_mode = #tpu.pipeline_mode<synchronous>, transform_indices = @transform_2, window_bounds = array<i64: 1, 128>}, {pipeline_mode = #tpu.pipeline_mode<synchronous>, transform_indices = @transform_3, window_bounds = array<i64: 128, 128>}, {pipeline_mode = #tpu.pipeline_mode<synchronous>, transform_indices = @transform_4, window_bounds = array<i64: 1, 128>}, {transform_indices = @transform_5, window_bounds = array<i64: 128, 128>}]} {
    %c0 = arith.constant 0 : index
    %c0_0 = arith.constant 0 : index
    %0 = vector.load %arg1[%c0, %c0_0] : memref<128x256xbf16, #tpu.memory_space<vmem>>, vector<128x256xbf16>
    %c0_1 = arith.constant 0 : index
    %c0_2 = arith.constant 0 : index
    %1 = vector.load %arg2[%c0_1, %c0_2] : memref<256x128xbf16, #tpu.memory_space<vmem>>, vector<256x128xbf16>
    %cst = arith.constant dense<0.000000e+00> : vector<128x128xf32>
    %2 = tpu.matmul %0, %1, %cst {dimension_numbers = #tpu.dot_dimension_numbers<[1], [0], [0], [1], [0, 0, 1, 1], [], []>} : vector<128x256xbf16>, vector<256x128xbf16>, vector<128x128xf32> -> vector<128x128xf32>
    %c0_3 = arith.constant 0 : index
    %c0_4 = arith.constant 0 : index
    %3 = vector.load %arg3[%c0_3, %c0_4] : memref<1x128xf32, #tpu.memory_space<vmem>>, vector<1x128xf32>
    %4 = vector.broadcast %3 : vector<1x128xf32> to vector<128x128xf32>
    %5 = arith.addf %2, %4 : vector<128x128xf32>
    %c0_5 = arith.constant 0 : index
    %c0_6 = arith.constant 0 : index
    %6 = vector.load %arg5[%c0_5, %c0_6] : memref<1x128xf32, #tpu.memory_space<vmem>>, vector<1x128xf32>
    %7 = arith.mulf %5, %5 : vector<128x128xf32>
    %c0_7 = arith.constant 0 : index
    %c0_8 = arith.constant 0 : index
    %8 = vector.load %arg4[%c0_7, %c0_8] : memref<128x128xf32, #tpu.memory_space<vmem>>, vector<128x128xf32>
    %cst_9 = arith.constant dense<0.000000e+00> : vector<128x128xf32>
    %9 = tpu.matmul %7, %8, %cst_9 {dimension_numbers = #tpu.dot_dimension_numbers<[1], [0], [0], [1], [0, 0, 1, 1], [], []>} : vector<128x128xf32>, vector<128x128xf32>, vector<128x128xf32> -> vector<128x128xf32>
    %10 = vector.broadcast %6 : vector<1x128xf32> to vector<128x128xf32>
    %11 = arith.addf %10, %9 : vector<128x128xf32>
    %12 = math.rsqrt %11 : vector<128x128xf32>
    %13 = arith.mulf %5, %12 : vector<128x128xf32>
    %c0_10 = arith.constant 0 : index
    %c0_11 = arith.constant 0 : index
    %14 = vector.load %arg6[%c0_10, %c0_11] : memref<128x128xf32, #tpu.memory_space<vmem>>, vector<128x128xf32>
    tpu.vector_store %arg6[%c0_10, %c0_11], %13 {strides = array<i32>} : memref<128x128xf32, #tpu.memory_space<vmem>>, vector<128x128xf32>,
    return
  }
  func.func @transform_0(%arg0: i32) -> (i32, i32) {
    %c0_i32 = arith.constant 0 : i32
    %c0_i32_0 = arith.constant 0 : i32
    return %arg0, %c0_i32 : i32, i32
  }
  func.func @transform_1(%arg0: i32) -> (i32, i32) {
    %c0_i32 = arith.constant 0 : i32
    %c0_i32_0 = arith.constant 0 : i32
    %c0_i32_1 = arith.constant 0 : i32
    return %c0_i32, %c0_i32_0 : i32, i32
  }
  func.func @transform_2(%arg0: i32) -> (i32, i32) {
    %c0_i32 = arith.constant 0 : i32
    %c0_i32_0 = arith.constant 0 : i32
    %c0_i32_1 = arith.constant 0 : i32
    return %c0_i32, %c0_i32_0 : i32, i32
  }
  func.func @transform_3(%arg0: i32) -> (i32, i32) {
    %c0_i32 = arith.constant 0 : i32
    %c0_i32_0 = arith.constant 0 : i32
    %c0_i32_1 = arith.constant 0 : i32
    return %c0_i32, %c0_i32_0 : i32, i32
  }
  func.func @transform_4(%arg0: i32) -> (i32, i32) {
    %c0_i32 = arith.constant 0 : i32
    %c0_i32_0 = arith.constant 0 : i32
    %c0_i32_1 = arith.constant 0 : i32
    return %c0_i32, %c0_i32_0 : i32, i32
  }
  func.func @transform_5(%arg0: i32) -> (i32, i32) {
    %c0_i32 = arith.constant 0 : i32
    %c0_i32_0 = arith.constant 0 : i32
    return %arg0, %c0_i32 : i32, i32
  }
}

module attributes {stable_mosaic.version = 11 : i64} {
  func.func @_conv_gdn_kernel(%arg0: i32, %arg1: memref<32x256xbf16, #tpu.memory_space<vmem>>, %arg2: memref<256x128xbf16, #tpu.memory_space<vmem>>, %arg3: memref<1x128xf32, #tpu.memory_space<vmem>>, %arg4: memref<128x128xf32, #tpu.memory_space<vmem>>, %arg5: memref<1x128xf32, #tpu.memory_space<vmem>>, %arg6: memref<32x128xf32, #tpu.memory_space<vmem>>) attributes {dimension_semantics = [#tpu.dimension_semantics<parallel>], iteration_bounds = array<i64: 1>, scalar_prefetch = 0 : i64, scratch_operands = 0 : i64, tpu.core_type = #tpu.core_type<tc>, window_params = [{transform_indices = @transform_0, window_bounds = array<i64: 32, 256>}, {pipeline_mode = #tpu.pipeline_mode<synchronous>, transform_indices = @transform_1, window_bounds = array<i64: 256, 128>}, {pipeline_mode = #tpu.pipeline_mode<synchronous>, transform_indices = @transform_2, window_bounds = array<i64: 1, 128>}, {pipeline_mode = #tpu.pipeline_mode<synchronous>, transform_indices = @transform_3, window_bounds = array<i64: 128, 128>}, {pipeline_mode = #tpu.pipeline_mode<synchronous>, transform_indices = @transform_4, window_bounds = array<i64: 1, 128>}, {transform_indices = @transform_5, window_bounds = array<i64: 32, 128>}]} {
    %c0 = arith.constant 0 : index
    %c0_0 = arith.constant 0 : index
    %0 = vector.load %arg1[%c0, %c0_0] : memref<32x256xbf16, #tpu.memory_space<vmem>>, vector<32x256xbf16>
    %c0_1 = arith.constant 0 : index
    %c0_2 = arith.constant 0 : index
    %1 = vector.load %arg2[%c0_1, %c0_2] : memref<256x128xbf16, #tpu.memory_space<vmem>>, vector<256x128xbf16>
    %cst = arith.constant dense<0.000000e+00> : vector<32x128xf32>
    %2 = tpu.matmul %0, %1, %cst {dimension_numbers = #tpu.dot_dimension_numbers<[1], [0], [0], [1], [0, 0, 1, 1], [], []>} : vector<32x256xbf16>, vector<256x128xbf16>, vector<32x128xf32> -> vector<32x128xf32>
    %c0_3 = arith.constant 0 : index
    %c0_4 = arith.constant 0 : index
    %3 = vector.load %arg3[%c0_3, %c0_4] : memref<1x128xf32, #tpu.memory_space<vmem>>, vector<1x128xf32>
    %4 = vector.broadcast %3 : vector<1x128xf32> to vector<32x128xf32>
    %5 = arith.addf %2, %4 : vector<32x128xf32>
    %c0_5 = arith.constant 0 : index
    %c0_6 = arith.constant 0 : index
    %6 = vector.load %arg5[%c0_5, %c0_6] : memref<1x128xf32, #tpu.memory_space<vmem>>, vector<1x128xf32>
    %7 = arith.mulf %5, %5 : vector<32x128xf32>
    %c0_7 = arith.constant 0 : index
    %c0_8 = arith.constant 0 : index
    %8 = vector.load %arg4[%c0_7, %c0_8] : memref<128x128xf32, #tpu.memory_space<vmem>>, vector<128x128xf32>
    %cst_9 = arith.constant dense<0.000000e+00> : vector<32x128xf32>
    %9 = tpu.matmul %7, %8, %cst_9 {dimension_numbers = #tpu.dot_dimension_numbers<[1], [0], [0], [1], [0, 0, 1, 1], [], []>} : vector<32x128xf32>, vector<128x128xf32>, vector<32x128xf32> -> vector<32x128xf32>
    %10 = vector.broadcast %6 : vector<1x128xf32> to vector<32x128xf32>
    %11 = arith.addf %10, %9 : vector<32x128xf32>
    %12 = math.rsqrt %11 : vector<32x128xf32>
    %13 = arith.mulf %5, %12 : vector<32x128xf32>
    %c0_10 = arith.constant 0 : index
    %c0_11 = arith.constant 0 : index
    %14 = vector.load %arg6[%c0_10, %c0_11] : memref<32x128xf32, #tpu.memory_space<vmem>>, vector<32x128xf32>
    tpu.vector_store %arg6[%c0_10, %c0_11], %13 {strides = array<i32>} : memref<32x128xf32, #tpu.memory_space<vmem>>, vector<32x128xf32>,
    return
  }
  func.func @transform_0(%arg0: i32) -> (i32, i32) {
    %c0_i32 = arith.constant 0 : i32
    %c0_i32_0 = arith.constant 0 : i32
    return %arg0, %c0_i32 : i32, i32
  }
  func.func @transform_1(%arg0: i32) -> (i32, i32) {
    %c0_i32 = arith.constant 0 : i32
    %c0_i32_0 = arith.constant 0 : i32
    %c0_i32_1 = arith.constant 0 : i32
    return %c0_i32, %c0_i32_0 : i32, i32
  }
  func.func @transform_2(%arg0: i32) -> (i32, i32) {
    %c0_i32 = arith.constant 0 : i32
    %c0_i32_0 = arith.constant 0 : i32
    %c0_i32_1 = arith.constant 0 : i32
    return %c0_i32, %c0_i32_0 : i32, i32
  }
  func.func @transform_3(%arg0: i32) -> (i32, i32) {
    %c0_i32 = arith.constant 0 : i32
    %c0_i32_0 = arith.constant 0 : i32
    %c0_i32_1 = arith.constant 0 : i32
    return %c0_i32, %c0_i32_0 : i32, i32
  }
  func.func @transform_4(%arg0: i32) -> (i32, i32) {
    %c0_i32 = arith.constant 0 : i32
    %c0_i32_0 = arith.constant 0 : i32
    %c0_i32_1 = arith.constant 0 : i32
    return %c0_i32, %c0_i32_0 : i32, i32
  }
  func.func @transform_5(%arg0: i32) -> (i32, i32) {
    %c0_i32 = arith.constant 0 : i32
    %c0_i32_0 = arith.constant 0 : i32
    return %arg0, %c0_i32 : i32, i32
  }
}

module attributes {stable_mosaic.version = 11 : i64} {
  func.func @_conv_gdn_kernel(%arg0: i32, %arg1: memref<16x256xbf16, #tpu.memory_space<vmem>>, %arg2: memref<256x128xbf16, #tpu.memory_space<vmem>>, %arg3: memref<1x128xf32, #tpu.memory_space<vmem>>, %arg4: memref<128x128xf32, #tpu.memory_space<vmem>>, %arg5: memref<1x128xf32, #tpu.memory_space<vmem>>, %arg6: memref<16x128xf32, #tpu.memory_space<vmem>>) attributes {dimension_semantics = [#tpu.dimension_semantics<parallel>], iteration_bounds = array<i64: 1>, scalar_prefetch = 0 : i64, scratch_operands = 0 : i64, tpu.core_type = #tpu.core_type<tc>, window_params = [{transform_indices = @transform_0, window_bounds = array<i64: 16, 256>}, {pipeline_mode = #tpu.pipeline_mode<synchronous>, transform_indices = @transform_1, window_bounds = array<i64: 256, 128>}, {pipeline_mode = #tpu.pipeline_mode<synchronous>, transform_indices = @transform_2, window_bounds = array<i64: 1, 128>}, {pipeline_mode = #tpu.pipeline_mode<synchronous>, transform_indices = @transform_3, window_bounds = array<i64: 128, 128>}, {pipeline_mode = #tpu.pipeline_mode<synchronous>, transform_indices = @transform_4, window_bounds = array<i64: 1, 128>}, {transform_indices = @transform_5, window_bounds = array<i64: 16, 128>}]} {
    %c0 = arith.constant 0 : index
    %c0_0 = arith.constant 0 : index
    %0 = vector.load %arg1[%c0, %c0_0] : memref<16x256xbf16, #tpu.memory_space<vmem>>, vector<16x256xbf16>
    %c0_1 = arith.constant 0 : index
    %c0_2 = arith.constant 0 : index
    %1 = vector.load %arg2[%c0_1, %c0_2] : memref<256x128xbf16, #tpu.memory_space<vmem>>, vector<256x128xbf16>
    %cst = arith.constant dense<0.000000e+00> : vector<16x128xf32>
    %2 = tpu.matmul %0, %1, %cst {dimension_numbers = #tpu.dot_dimension_numbers<[1], [0], [0], [1], [0, 0, 1, 1], [], []>} : vector<16x256xbf16>, vector<256x128xbf16>, vector<16x128xf32> -> vector<16x128xf32>
    %c0_3 = arith.constant 0 : index
    %c0_4 = arith.constant 0 : index
    %3 = vector.load %arg3[%c0_3, %c0_4] : memref<1x128xf32, #tpu.memory_space<vmem>>, vector<1x128xf32>
    %4 = vector.broadcast %3 : vector<1x128xf32> to vector<16x128xf32>
    %5 = arith.addf %2, %4 : vector<16x128xf32>
    %c0_5 = arith.constant 0 : index
    %c0_6 = arith.constant 0 : index
    %6 = vector.load %arg5[%c0_5, %c0_6] : memref<1x128xf32, #tpu.memory_space<vmem>>, vector<1x128xf32>
    %7 = arith.mulf %5, %5 : vector<16x128xf32>
    %c0_7 = arith.constant 0 : index
    %c0_8 = arith.constant 0 : index
    %8 = vector.load %arg4[%c0_7, %c0_8] : memref<128x128xf32, #tpu.memory_space<vmem>>, vector<128x128xf32>
    %cst_9 = arith.constant dense<0.000000e+00> : vector<16x128xf32>
    %9 = tpu.matmul %7, %8, %cst_9 {dimension_numbers = #tpu.dot_dimension_numbers<[1], [0], [0], [1], [0, 0, 1, 1], [], []>} : vector<16x128xf32>, vector<128x128xf32>, vector<16x128xf32> -> vector<16x128xf32>
    %10 = vector.broadcast %6 : vector<1x128xf32> to vector<16x128xf32>
    %11 = arith.addf %10, %9 : vector<16x128xf32>
    %12 = math.rsqrt %11 : vector<16x128xf32>
    %13 = arith.mulf %5, %12 : vector<16x128xf32>
    %c0_10 = arith.constant 0 : index
    %c0_11 = arith.constant 0 : index
    %14 = vector.load %arg6[%c0_10, %c0_11] : memref<16x128xf32, #tpu.memory_space<vmem>>, vector<16x128xf32>
    tpu.vector_store %arg6[%c0_10, %c0_11], %13 {strides = array<i32>} : memref<16x128xf32, #tpu.memory_space<vmem>>, vector<16x128xf32>,
    return
  }
  func.func @transform_0(%arg0: i32) -> (i32, i32) {
    %c0_i32 = arith.constant 0 : i32
    %c0_i32_0 = arith.constant 0 : i32
    return %arg0, %c0_i32 : i32, i32
  }
  func.func @transform_1(%arg0: i32) -> (i32, i32) {
    %c0_i32 = arith.constant 0 : i32
    %c0_i32_0 = arith.constant 0 : i32
    %c0_i32_1 = arith.constant 0 : i32
    return %c0_i32, %c0_i32_0 : i32, i32
  }
  func.func @transform_2(%arg0: i32) -> (i32, i32) {
    %c0_i32 = arith.constant 0 : i32
    %c0_i32_0 = arith.constant 0 : i32
    %c0_i32_1 = arith.constant 0 : i32
    return %c0_i32, %c0_i32_0 : i32, i32
  }
  func.func @transform_3(%arg0: i32) -> (i32, i32) {
    %c0_i32 = arith.constant 0 : i32
    %c0_i32_0 = arith.constant 0 : i32
    %c0_i32_1 = arith.constant 0 : i32
    return %c0_i32, %c0_i32_0 : i32, i32
  }
  func.func @transform_4(%arg0: i32) -> (i32, i32) {
    %c0_i32 = arith.constant 0 : i32
    %c0_i32_0 = arith.constant 0 : i32
    %c0_i32_1 = arith.constant 0 : i32
    return %c0_i32, %c0_i32_0 : i32, i32
  }
  func.func @transform_5(%arg0: i32) -> (i32, i32) {
    %c0_i32 = arith.constant 0 : i32
    %c0_i32_0 = arith.constant 0 : i32
    return %arg0, %c0_i32 : i32, i32
  }
}

module attributes {stable_mosaic.version = 11 : i64} {
  func.func @_conv_kernel(%arg0: i32, %arg1: memref<16x256xbf16, #tpu.memory_space<vmem>>, %arg2: memref<256x128xbf16, #tpu.memory_space<vmem>>, %arg3: memref<1x128xf32, #tpu.memory_space<vmem>>, %arg4: memref<16x128xf32, #tpu.memory_space<vmem>>) attributes {dimension_semantics = [#tpu.dimension_semantics<parallel>], iteration_bounds = array<i64: 1>, scalar_prefetch = 0 : i64, scratch_operands = 0 : i64, tpu.core_type = #tpu.core_type<tc>, window_params = [{transform_indices = @transform_0, window_bounds = array<i64: 16, 256>}, {pipeline_mode = #tpu.pipeline_mode<synchronous>, transform_indices = @transform_1, window_bounds = array<i64: 256, 128>}, {pipeline_mode = #tpu.pipeline_mode<synchronous>, transform_indices = @transform_2, window_bounds = array<i64: 1, 128>}, {transform_indices = @transform_3, window_bounds = array<i64: 16, 128>}]} {
    %c0 = arith.constant 0 : index
    %c0_0 = arith.constant 0 : index
    %0 = vector.load %arg1[%c0, %c0_0] : memref<16x256xbf16, #tpu.memory_space<vmem>>, vector<16x256xbf16>
    %c0_1 = arith.constant 0 : index
    %c0_2 = arith.constant 0 : index
    %1 = vector.load %arg2[%c0_1, %c0_2] : memref<256x128xbf16, #tpu.memory_space<vmem>>, vector<256x128xbf16>
    %cst = arith.constant dense<0.000000e+00> : vector<16x128xf32>
    %2 = tpu.matmul %0, %1, %cst {dimension_numbers = #tpu.dot_dimension_numbers<[1], [0], [0], [1], [0, 0, 1, 1], [], []>} : vector<16x256xbf16>, vector<256x128xbf16>, vector<16x128xf32> -> vector<16x128xf32>
    %c0_3 = arith.constant 0 : index
    %c0_4 = arith.constant 0 : index
    %3 = vector.load %arg3[%c0_3, %c0_4] : memref<1x128xf32, #tpu.memory_space<vmem>>, vector<1x128xf32>
    %4 = vector.broadcast %3 : vector<1x128xf32> to vector<16x128xf32>
    %5 = arith.addf %2, %4 : vector<16x128xf32>
    %c0_5 = arith.constant 0 : index
    %c0_6 = arith.constant 0 : index
    %6 = vector.load %arg4[%c0_5, %c0_6] : memref<16x128xf32, #tpu.memory_space<vmem>>, vector<16x128xf32>
    tpu.vector_store %arg4[%c0_5, %c0_6], %5 {strides = array<i32>} : memref<16x128xf32, #tpu.memory_space<vmem>>, vector<16x128xf32>,
    return
  }
  func.func @transform_0(%arg0: i32) -> (i32, i32) {
    %c0_i32 = arith.constant 0 : i32
    %c0_i32_0 = arith.constant 0 : i32
    return %arg0, %c0_i32 : i32, i32
  }
  func.func @transform_1(%arg0: i32) -> (i32, i32) {
    %c0_i32 = arith.constant 0 : i32
    %c0_i32_0 = arith.constant 0 : i32
    %c0_i32_1 = arith.constant 0 : i32
    return %c0_i32, %c0_i32_0 : i32, i32
  }
  func.func @transform_2(%arg0: i32) -> (i32, i32) {
    %c0_i32 = arith.constant 0 : i32
    %c0_i32_0 = arith.constant 0 : i32
    %c0_i32_1 = arith.constant 0 : i32
    return %c0_i32, %c0_i32_0 : i32, i32
  }
  func.func @transform_3(%arg0: i32) -> (i32, i32) {
    %c0_i32 = arith.constant 0 : i32
    %c0_i32_0 = arith.constant 0 : i32
    return %arg0, %c0_i32 : i32, i32
  }
}

</mosaic_0001>

<llo_original>
// kernel: temporal_prior_encoder.4
$region0: #{temporal_prior_encoder.4}
  #allocation0 [shape = 'u32[]', space=smem, size = 0x4, offset = 0x4, fixed_abs, tag = 'smem constant byte address 0x4 - core index']
  #allocation1 [shape = 'u32[144,128]{1,0:T(1,128)}', space=vmem, size = 0x12000, scoped, tag = 'internal scratch']
  %s0 = inlined_call_operand.vmem [shape: bf16[128,256], index: 0, kind: input, shape index: {}]
  %s1 = inlined_call_operand.vmem [shape: bf16[256,128], index: 1, kind: input, shape index: {}]
  %s2 = inlined_call_operand.vmem [shape: f32[1,128], index: 2, kind: input, shape index: {}]
  %s3 = inlined_call_operand.vmem [shape: f32[128,128], index: 3, kind: input, shape index: {}]
  %s4 = inlined_call_operand.vmem [shape: f32[1,128], index: 4, kind: input, shape index: {}]
  %s5 = inlined_call_operand.vmem [shape: f32[128,128], index: 5, kind: output, shape index: {}]
  %s6 = sld [smem:[#allocation0]]
  $region30: #{temporal_prior_encoder.4} parent=0
    _
  %s8 = ssub.s32 1, %s6
  %s9 = scalar_select 0, %s8, %s6
  // Predicated region
  $region2: #{temporal_prior_encoder.4} parent=0 // pred_check
    _
  $region3: #{temporal_prior_encoder.4} parent=0 // pred_check_branch
    %11 = sbr.rel (0) target = $region5
  $region4: #{temporal_prior_encoder.4} parent=0 // pred_region
    _
  $region5: #{temporal_prior_encoder.4} parent=0 // pred_fallthru
    _
  // Predicated region
  $region6: #{temporal_prior_encoder.4} parent=0 // pred_check
    _
  $region7: #{temporal_prior_encoder.4} parent=0 // pred_check_branch
    %13 = sbr.rel (0) target = $region9
  $region8: #{temporal_prior_encoder.4} parent=0 // pred_region
    _
  $region9: #{temporal_prior_encoder.4} parent=0 // pred_fallthru
    _
  // Predicated region
  $region10: #{temporal_prior_encoder.4} parent=0 // pred_check
    _
  $region11: #{temporal_prior_encoder.4} parent=0 // pred_check_branch
    %15 = sbr.rel (0) target = $region13
  $region12: #{temporal_prior_encoder.4} parent=0 // pred_region
    _
  $region13: #{temporal_prior_encoder.4} parent=0 // pred_fallthru
    _
  // Predicated region
  $region14: #{temporal_prior_encoder.4} parent=0 // pred_check
    _
  $region15: #{temporal_prior_encoder.4} parent=0 // pred_check_branch
    %17 = sbr.rel (0) target = $region17
  $region16: #{temporal_prior_encoder.4} parent=0 // pred_region
    _
  $region17: #{temporal_prior_encoder.4} parent=0 // pred_fallthru
    _
  // Predicated region
  $region18: #{temporal_prior_encoder.4} parent=0 // pred_check
    _
  $region19: #{temporal_prior_encoder.4} parent=0 // pred_check_branch
    %19 = sbr.rel (0) target = $region21
  $region20: #{temporal_prior_encoder.4} parent=0 // pred_region
    _
  $region21: #{temporal_prior_encoder.4} parent=0 // pred_fallthru
    _
  %v21 = vld [vmem:[%s0] sm:$0xff]
  %v22 = vld [vmem:[%s0 + $0x8] sm:$0xff]
  %v23 = vld [vmem:[%s0 + $0x10] sm:$0xff]
  %v24 = vld [vmem:[%s0 + $0x18] sm:$0xff]
  %v25 = vld [vmem:[%s0 + $0x20] sm:$0xff]
  %v26 = vld [vmem:[%s0 + $0x28] sm:$0xff]
  %v27 = vld [vmem:[%s0 + $0x30] sm:$0xff]
  %v28 = vld [vmem:[%s0 + $0x38] sm:$0xff]
  %v29 = vld [vmem:[%s0 + $0x40] sm:$0xff]
  %v30 = vld [vmem:[%s0 + $0x48] sm:$0xff]
  %v31 = vld [vmem:[%s0 + $0x50] sm:$0xff]
  %v32 = vld [vmem:[%s0 + $0x58] sm:$0xff]
  %v33 = vld [vmem:[%s0 + $0x60] sm:$0xff]
  %v34 = vld [vmem:[%s0 + $0x68] sm:$0xff]
  %v35 = vld [vmem:[%s0 + $0x70] sm:$0xff]
  %v36 = vld [vmem:[%s0 + $0x78] sm:$0xff]
  %v37 = vld [vmem:[%s1] sm:$0xf]
  %v38 = vld [vmem:[%s1 + $0x4] sm:$0xf]
  %v39 = vld [vmem:[%s1 + $0x8] sm:$0xf]
  %v40 = vld [vmem:[%s1 + $0xc] sm:$0xf]
  %v41 = vld [vmem:[%s1 + $0x10] sm:$0xf]
  %v42 = vld [vmem:[%s1 + $0x14] sm:$0xf]
  %v43 = vld [vmem:[%s1 + $0x18] sm:$0xf]
  %v44 = vld [vmem:[%s1 + $0x1c] sm:$0xf]
  %v45 = vld [vmem:[%s1 + $0x20] sm:$0xf]
  %v46 = vld [vmem:[%s1 + $0x24] sm:$0xf]
  %v47 = vld [vmem:[%s1 + $0x28] sm:$0xf]
  %v48 = vld [vmem:[%s1 + $0x2c] sm:$0xf]
  %v49 = vld [vmem:[%s1 + $0x30] sm:$0xf]
  %v50 = vld [vmem:[%s1 + $0x34] sm:$0xf]
  %v51 = vld [vmem:[%s1 + $0x38] sm:$0xf]
  %v52 = vld [vmem:[%s1 + $0x3c] sm:$0xf]
  %v53 = vld [vmem:[%s1 + $0x40] sm:$0xf]
  %v54 = vld [vmem:[%s1 + $0x44] sm:$0xf]
  %v55 = vld [vmem:[%s1 + $0x48] sm:$0xf]
  %v56 = vld [vmem:[%s1 + $0x4c] sm:$0xf]
  %v57 = vld [vmem:[%s1 + $0x50] sm:$0xf]
  %v58 = vld [vmem:[%s1 + $0x54] sm:$0xf]
  %v59 = vld [vmem:[%s1 + $0x58] sm:$0xf]
  %v60 = vld [vmem:[%s1 + $0x5c] sm:$0xf]
  %v61 = vld [vmem:[%s1 + $0x60] sm:$0xf]
  %v62 = vld [vmem:[%s1 + $0x64] sm:$0xf]
  %v63 = vld [vmem:[%s1 + $0x68] sm:$0xf]
  %v64 = vld [vmem:[%s1 + $0x6c] sm:$0xf]
  %v65 = vld [vmem:[%s1 + $0x70] sm:$0xf]
  %v66 = vld [vmem:[%s1 + $0x74] sm:$0xf]
  %v67 = vld [vmem:[%s1 + $0x78] sm:$0xf]
  %v68 = vld [vmem:[%s1 + $0x7c] sm:$0xf]
  %v69 = vld [vmem:[%s2] sm:$0x1]
  %v71 = vlaneseq
  %v72 = vshrl.u32 %v71, 7
  %v73 = vsub.s32 0, %v72
  %v74 = vrot.slane %v69, %v73
  %v92 = vunpack.c.l.b16 %v21
  %v93 = vunpack.c.h.b16 %v21
  %v94 = vunpack.c.l.b16 %v22
  %v95 = vunpack.c.h.b16 %v22
  %v96 = vunpack.c.l.b16 %v23
  %v97 = vunpack.c.h.b16 %v23
  %v98 = vunpack.c.l.b16 %v24
  %v99 = vunpack.c.h.b16 %v24
  %v100 = vunpack.c.l.b16 %v25
  %v101 = vunpack.c.h.b16 %v25
  %v102 = vunpack.c.l.b16 %v26
  %v103 = vunpack.c.h.b16 %v26
  %v104 = vunpack.c.l.b16 %v27
  %v105 = vunpack.c.h.b16 %v27
  %v106 = vunpack.c.l.b16 %v28
  %v107 = vunpack.c.h.b16 %v28
  %v108 = vunpack.c.l.b16 %v29
  %v109 = vunpack.c.h.b16 %v29
  %v110 = vunpack.c.l.b16 %v30
  %v111 = vunpack.c.h.b16 %v30
  %v112 = vunpack.c.l.b16 %v31
  %v113 = vunpack.c.h.b16 %v31
  %v114 = vunpack.c.l.b16 %v32
  %v115 = vunpack.c.h.b16 %v32
  %v116 = vunpack.c.l.b16 %v33
  %v117 = vunpack.c.h.b16 %v33
  %v118 = vunpack.c.l.b16 %v34
  %v119 = vunpack.c.h.b16 %v34
  %v120 = vunpack.c.l.b16 %v35
  %v121 = vunpack.c.h.b16 %v35
  %v122 = vunpack.c.l.b16 %v36
  %v123 = vunpack.c.h.b16 %v36
  %v124 = vpack.c.b16 %v94, %v92
  %v125 = vpack.c.b16 %v95, %v93
  %v126 = vpack.c.b16 %v98, %v96
  %v127 = vpack.c.b16 %v99, %v97
  %v128 = vpack.c.b16 %v102, %v100
  %v129 = vpack.c.b16 %v103, %v101
  %v130 = vpack.c.b16 %v106, %v104
  %v131 = vpack.c.b16 %v107, %v105
  %v132 = vpack.c.b16 %v110, %v108
  %v133 = vpack.c.b16 %v111, %v109
  %v134 = vpack.c.b16 %v114, %v112
  %v135 = vpack.c.b16 %v115, %v113
  %v136 = vpack.c.b16 %v118, %v116
  %v137 = vpack.c.b16 %v119, %v117
  %v138 = vpack.c.b16 %v122, %v120
  %v139 = vpack.c.b16 %v123, %v121
  %v188 = vunpack.c.l.b16 %v37
  %v189 = vunpack.c.l.b16 %v38
  %v190 = vunpack.c.l.b16 %v39
  %v191 = vunpack.c.l.b16 %v40
  %v192 = vunpack.c.l.b16 %v41
  %v193 = vunpack.c.l.b16 %v42
  %v194 = vunpack.c.l.b16 %v43
  %v195 = vunpack.c.l.b16 %v44
  %v196 = vunpack.c.l.b16 %v45
  %v197 = vunpack.c.l.b16 %v46
  %v198 = vunpack.c.l.b16 %v47
  %v199 = vunpack.c.l.b16 %v48
  %v200 = vunpack.c.l.b16 %v49
  %v201 = vunpack.c.l.b16 %v50
  %v202 = vunpack.c.l.b16 %v51
  %v203 = vunpack.c.l.b16 %v52
  %v204 = vunpack.c.l.b16 %v53
  %v205 = vunpack.c.l.b16 %v54
  %v206 = vunpack.c.l.b16 %v55
  %v207 = vunpack.c.l.b16 %v56
  %v208 = vunpack.c.l.b16 %v57
  %v209 = vunpack.c.l.b16 %v58
  %v210 = vunpack.c.l.b16 %v59
  %v211 = vunpack.c.l.b16 %v60
  %v212 = vunpack.c.l.b16 %v61
  %v213 = vunpack.c.l.b16 %v62
  %v214 = vunpack.c.l.b16 %v63
  %v215 = vunpack.c.l.b16 %v64
  %v216 = vunpack.c.l.b16 %v65
  %v217 = vunpack.c.l.b16 %v66
  %v218 = vunpack.c.l.b16 %v67
  %v219 = vunpack.c.l.b16 %v68
  %v220 = vpack.c.b16 %v189, %v188
  %v221 = vpack.c.b16 %v191, %v190
  %v222 = vpack.c.b16 %v193, %v192
  %v223 = vpack.c.b16 %v195, %v194
  %v224 = vpack.c.b16 %v197, %v196
  %v225 = vpack.c.b16 %v199, %v198
  %v226 = vpack.c.b16 %v201, %v200
  %v227 = vpack.c.b16 %v203, %v202
  %v228 = vpack.c.b16 %v205, %v204
  %v229 = vpack.c.b16 %v207, %v206
  %v230 = vpack.c.b16 %v209, %v208
  %v231 = vpack.c.b16 %v211, %v210
  %v232 = vpack.c.b16 %v213, %v212
  %v233 = vpack.c.b16 %v215, %v214
  %v234 = vpack.c.b16 %v217, %v216
  %v235 = vpack.c.b16 %v219, %v218
  %252 = vmatprep.subr.bf16.mxu0 0
  %253 = vmatpush1.bf16.msra.mxu0 %v220
  %254 = vmatprep.subr.bf16.mxu0 0
  %255 = vmatpush1.bf16.msra.mxu0 %v221
  %256 = vmatprep.subr.bf16.mxu0 0
  %257 = vmatpush1.bf16.msra.mxu0 %v222
  %258 = vmatprep.subr.bf16.mxu0 0
  %259 = vmatpush1.bf16.msra.mxu0 %v223
  %260 = vmatprep.subr.bf16.mxu0 0
  %261 = vmatpush1.bf16.msra.mxu0 %v224
  %262 = vmatprep.subr.bf16.mxu0 0
  %263 = vmatpush1.bf16.msra.mxu0 %v225
  %264 = vmatprep.subr.bf16.mxu0 0
  %265 = vmatpush1.bf16.msra.mxu0 %v226
  %266 = vmatprep.subr.bf16.mxu0 0
  %267 = vmatpush1.bf16.msra.mxu0 %v227
  %268 = vmatprep.subr.bf16.mxu0 0
  %269 = vmatpush1.bf16.msra.mxu0 %v228
  %270 = vmatprep.subr.bf16.mxu0 0
  %271 = vmatpush1.bf16.msra.mxu0 %v229
  %272 = vmatprep.subr.bf16.mxu0 0
  %273 = vmatpush1.bf16.msra.mxu0 %v230
  %274 = vmatprep.subr.bf16.mxu0 0
  %275 = vmatpush1.bf16.msra.mxu0 %v231
  %276 = vmatprep.subr.bf16.mxu0 0
  %277 = vmatpush1.bf16.msra.mxu0 %v232
  %278 = vmatprep.subr.bf16.mxu0 0
  %279 = vmatpush1.bf16.msra.mxu0 %v233
  %280 = vmatprep.subr.bf16.mxu0 0
  %281 = vmatpush1.bf16.msra.mxu0 %v234
  %282 = vmatprep.subr.bf16.mxu0 0
  %283 = vmatpush1.bf16.msra.mxu0 %v235
  %284 = vmatprep.mubr.bf16.mxu0 %v125
  %285 = vmatmul.mubr.bf16.gmra.mrb[0].mxu0 %v124
  %v286 = vpop.f32.mrb[0].mxu0
  %v287 = vadd.f32 %v74, %v286
  %v288 = vpop.f32.mrb[0].mxu0
  %v289 = vpop.f32.mrb[0].mxu0
  %v290 = vadd.f32 %v74, %v289
  %v291 = vpop.f32.mrb[0].mxu0
  %292 = vmatprep.mubr.bf16.mxu0 %v127
  %293 = vmatmul.mubr.bf16.gmra.mrb[0].mxu0 %v126
  %v294 = vpop.f32.mrb[0].mxu0
  %v295 = vadd.f32 %v74, %v294
  %v296 = vpop.f32.mrb[0].mxu0
  %v297 = vpop.f32.mrb[0].mxu0
  %v298 = vadd.f32 %v74, %v297
  %v299 = vpop.f32.mrb[0].mxu0
  %300 = vmatprep.mubr.bf16.mxu0 %v129
  %301 = vmatmul.mubr.bf16.gmra.mrb[0].mxu0 %v128
  %v302 = vpop.f32.mrb[0].mxu0
  %v303 = vadd.f32 %v74, %v302
  %v304 = vpop.f32.mrb[0].mxu0
  %v305 = vpop.f32.mrb[0].mxu0
  %v306 = vadd.f32 %v74, %v305
  %v307 = vpop.f32.mrb[0].mxu0
  %308 = vmatprep.mubr.bf16.mxu0 %v131
  %309 = vmatmul.mubr.bf16.gmra.mrb[0].mxu0 %v130
  %v310 = vpop.f32.mrb[0].mxu0
  %v311 = vadd.f32 %v74, %v310
  %v312 = vpop.f32.mrb[0].mxu0
  %v313 = vpop.f32.mrb[0].mxu0
  %v314 = vadd.f32 %v74, %v313
  %v315 = vpop.f32.mrb[0].mxu0
  %316 = vmatprep.mubr.bf16.mxu0 %v133
  %317 = vmatmul.mubr.bf16.gmra.mrb[0].mxu0 %v132
  %v318 = vpop.f32.mrb[0].mxu0
  %v319 = vadd.f32 %v74, %v318
  %v320 = vpop.f32.mrb[0].mxu0
  %v321 = vpop.f32.mrb[0].mxu0
  %v322 = vadd.f32 %v74, %v321
  %v323 = vpop.f32.mrb[0].mxu0
  %324 = vmatprep.mubr.bf16.mxu0 %v135
  %325 = vmatmul.mubr.bf16.gmra.mrb[0].mxu0 %v134
  %v326 = vpop.f32.mrb[0].mxu0
  %v327 = vadd.f32 %v74, %v326
  %v328 = vpop.f32.mrb[0].mxu0
  %v329 = vpop.f32.mrb[0].mxu0
  %v330 = vadd.f32 %v74, %v329
  %v331 = vpop.f32.mrb[0].mxu0
  %332 = vmatprep.mubr.bf16.mxu0 %v137
  %333 = vmatmul.mubr.bf16.gmra.mrb[0].mxu0 %v136
  %v334 = vpop.f32.mrb[0].mxu0
  %v335 = vadd.f32 %v74, %v334
  %v336 = vpop.f32.mrb[0].mxu0
  %v337 = vpop.f32.mrb[0].mxu0
  %v338 = vadd.f32 %v74, %v337
  %v339 = vpop.f32.mrb[0].mxu0
  %340 = vmatprep.mubr.bf16.mxu0 %v139
  %341 = vmatmul.mubr.bf16.gmra.mrb[0].mxu0 %v138
  %v342 = vpop.f32.mrb[0].mxu0
  %v343 = vadd.f32 %v74, %v342
  %v344 = vpop.f32.mrb[0].mxu0
  %v345 = vpop.f32.mrb[0].mxu0
  %v346 = vadd.f32 %v74, %v345
  %v347 = vpop.f32.mrb[0].mxu0
  %348 = vdwg.mxu0
  %v349 = vld [vmem:[%s4] sm:$0x1]
  %v350 = vmul.f32 %v287, %v287
  %v351 = vmul.f32 %v290, %v290
  %v352 = vmul.f32 %v295, %v295
  %v353 = vmul.f32 %v298, %v298
  %v354 = vmul.f32 %v303, %v303
  %v355 = vmul.f32 %v306, %v306
  %v356 = vmul.f32 %v311, %v311
  %v357 = vmul.f32 %v314, %v314
  %v358 = vmul.f32 %v319, %v319
  %v359 = vmul.f32 %v322, %v322
  %v360 = vmul.f32 %v327, %v327
  %v361 = vmul.f32 %v330, %v330
  %v362 = vmul.f32 %v335, %v335
  %v363 = vmul.f32 %v338, %v338
  %v364 = vmul.f32 %v343, %v343
  %v365 = vmul.f32 %v346, %v346
  %v366 = vld [vmem:[%s3] sm:$0xff]
  %v367 = vld [vmem:[%s3 + $0x8] sm:$0xff]
  %v368 = vld [vmem:[%s3 + $0x10] sm:$0xff]
  %v369 = vld [vmem:[%s3 + $0x18] sm:$0xff]
  %v370 = vld [vmem:[%s3 + $0x20] sm:$0xff]
  %v371 = vld [vmem:[%s3 + $0x28] sm:$0xff]
  %v372 = vld [vmem:[%s3 + $0x30] sm:$0xff]
  %v373 = vld [vmem:[%s3 + $0x38] sm:$0xff]
  %v374 = vld [vmem:[%s3 + $0x40] sm:$0xff]
  %v375 = vld [vmem:[%s3 + $0x48] sm:$0xff]
  %v376 = vld [vmem:[%s3 + $0x50] sm:$0xff]
  %v377 = vld [vmem:[%s3 + $0x58] sm:$0xff]
  %v378 = vld [vmem:[%s3 + $0x60] sm:$0xff]
  %v379 = vld [vmem:[%s3 + $0x68] sm:$0xff]
  %v380 = vld [vmem:[%s3 + $0x70] sm:$0xff]
  %v381 = vld [vmem:[%s3 + $0x78] sm:$0xff]
  %382 = vmatprep.subr.mxu0 0.0
  %383 = vmatpush1.msra.mxu0 %v366
  %384 = vmatprep.subr.mxu0 0.0
  %385 = vmatpush1.msra.mxu0 %v367
  %386 = vmatprep.subr.mxu0 0.0
  %387 = vmatpush1.msra.mxu0 %v368
  %388 = vmatprep.subr.mxu0 0.0
  %389 = vmatpush1.msra.mxu0 %v369
  %390 = vmatprep.subr.mxu0 0.0
  %391 = vmatpush1.msra.mxu0 %v370
  %392 = vmatprep.subr.mxu0 0.0
  %393 = vmatpush1.msra.mxu0 %v371
  %394 = vmatprep.subr.mxu0 0.0
  %395 = vmatpush1.msra.mxu0 %v372
  %396 = vmatprep.subr.mxu0 0.0
  %397 = vmatpush1.msra.mxu0 %v373
  %398 = vmatprep.subr.mxu0 0.0
  %399 = vmatpush1.msra.mxu0 %v374
  %400 = vmatprep.subr.mxu0 0.0
  %401 = vmatpush1.msra.mxu0 %v375
  %402 = vmatprep.subr.mxu0 0.0
  %403 = vmatpush1.msra.mxu0 %v376
  %404 = vmatprep.subr.mxu0 0.0
  %405 = vmatpush1.msra.mxu0 %v377
  %406 = vmatprep.subr.mxu0 0.0
  %407 = vmatpush1.msra.mxu0 %v378
  %408 = vmatprep.subr.mxu0 0.0
  %409 = vmatpush1.msra.mxu0 %v379
  %410 = vmatprep.subr.mxu0 0.0
  %411 = vmatpush1.msra.mxu0 %v380
  %412 = vmatprep.subr.mxu0 0.0
  %413 = vmatpush1.msra.mxu0 %v381
  %414 = vmatprep.subr.mxu0 0.0
  %415 = vmatpush1.msra.mxu0 0.0
  %416 = vmatprep.subr.mxu0 0.0
  %417 = vmatpush1.msra.mxu0 0.0
  %418 = vmatprep.subr.mxu0 0.0
  %419 = vmatpush1.msra.mxu0 0.0
  %420 = vmatprep.subr.mxu0 0.0
  %421 = vmatpush1.msra.mxu0 0.0
  %422 = vmatprep.subr.mxu0 0.0
  %423 = vmatpush1.msra.mxu0 0.0
  %424 = vmatprep.subr.mxu0 0.0
  %425 = vmatpush1.msra.mxu0 0.0
  %426 = vmatprep.subr.mxu0 0.0
  %427 = vmatpush1.msra.mxu0 0.0
  %428 = vmatprep.subr.mxu0 0.0
  %429 = vmatpush1.msra.mxu0 0.0
  %430 = vmatprep.subr.mxu0 0.0
  %431 = vmatpush1.msra.mxu0 0.0
  %432 = vmatprep.subr.mxu0 0.0
  %433 = vmatpush1.msra.mxu0 0.0
  %434 = vmatprep.subr.mxu0 0.0
  %435 = vmatpush1.msra.mxu0 0.0
  %436 = vmatprep.subr.mxu0 0.0
  %437 = vmatpush1.msra.mxu0 0.0
  %438 = vmatprep.subr.mxu0 0.0
  %439 = vmatpush1.msra.mxu0 0.0
  %440 = vmatprep.subr.mxu0 0.0
  %441 = vmatpush1.msra.mxu0 0.0
  %442 = vmatprep.subr.mxu0 0.0
  %443 = vmatpush1.msra.mxu0 0.0
  %444 = vmatprep.subr.mxu0 0.0
  %445 = vmatpush1.msra.mxu0 0.0
  %446 = vmatprep.mubr.f32.mxu0 0.0
  %447 = vmatmul.mubr.f32.gmra.mrb[0].mxu0 %v350
  %v448 = vpop.f32.mrb[0].mxu0
  %v449 = vadd.f32 0.0, %v448
  %v450 = vpop.f32.mrb[0].mxu0
  %451 = vmatprep.mubr.f32.mxu0 0.0
  %452 = vmatmul.mubr.f32.gmra.mrb[0].mxu0 %v351
  %v453 = vpop.f32.mrb[0].mxu0
  %v454 = vadd.f32 0.0, %v453
  %v455 = vpop.f32.mrb[0].mxu0
  %456 = vmatprep.mubr.f32.mxu0 0.0
  %457 = vmatmul.mubr.f32.gmra.mrb[0].mxu0 %v352
  %v458 = vpop.f32.mrb[0].mxu0
  %v459 = vadd.f32 0.0, %v458
  %v460 = vpop.f32.mrb[0].mxu0
  %461 = vmatprep.mubr.f32.mxu0 0.0
  %462 = vmatmul.mubr.f32.gmra.mrb[0].mxu0 %v353
  %v463 = vpop.f32.mrb[0].mxu0
  %v464 = vadd.f32 0.0, %v463
  %v465 = vpop.f32.mrb[0].mxu0
  %466 = vmatprep.mubr.f32.mxu0 0.0
  %467 = vmatmul.mubr.f32.gmra.mrb[0].mxu0 %v354
  %v468 = vpop.f32.mrb[0].mxu0
  %v469 = vadd.f32 0.0, %v468
  %v470 = vpop.f32.mrb[0].mxu0
  %471 = vmatprep.mubr.f32.mxu0 0.0
  %472 = vmatmul.mubr.f32.gmra.mrb[0].mxu0 %v355
  %v473 = vpop.f32.mrb[0].mxu0
  %v474 = vadd.f32 0.0, %v473
  %v475 = vpop.f32.mrb[0].mxu0
  %476 = vmatprep.mubr.f32.mxu0 0.0
  %477 = vmatmul.mubr.f32.gmra.mrb[0].mxu0 %v356
  %v478 = vpop.f32.mrb[0].mxu0
  %v479 = vadd.f32 0.0, %v478
  %v480 = vpop.f32.mrb[0].mxu0
  %481 = vmatprep.mubr.f32.mxu0 0.0
  %482 = vmatmul.mubr.f32.gmra.mrb[0].mxu0 %v357
  %v483 = vpop.f32.mrb[0].mxu0
  %v484 = vadd.f32 0.0, %v483
  %v485 = vpop.f32.mrb[0].mxu0
  %486 = vmatprep.mubr.f32.mxu0 0.0
  %487 = vmatmul.mubr.f32.gmra.mrb[0].mxu0 %v358
  %v488 = vpop.f32.mrb[0].mxu0
  %v489 = vadd.f32 0.0, %v488
  %v490 = vpop.f32.mrb[0].mxu0
  %491 = vmatprep.mubr.f32.mxu0 0.0
  %492 = vmatmul.mubr.f32.gmra.mrb[0].mxu0 %v359
  %v493 = vpop.f32.mrb[0].mxu0
  %v494 = vadd.f32 0.0, %v493
  %v495 = vpop.f32.mrb[0].mxu0
  %496 = vmatprep.mubr.f32.mxu0 0.0
  %497 = vmatmul.mubr.f32.gmra.mrb[0].mxu0 %v360
  %v498 = vpop.f32.mrb[0].mxu0
  %v499 = vadd.f32 0.0, %v498
  %v500 = vpop.f32.mrb[0].mxu0
  %501 = vmatprep.mubr.f32.mxu0 0.0
  %502 = vmatmul.mubr.f32.gmra.mrb[0].mxu0 %v361
  %v503 = vpop.f32.mrb[0].mxu0
  %v504 = vadd.f32 0.0, %v503
  %v505 = vpop.f32.mrb[0].mxu0
  %506 = vmatprep.mubr.f32.mxu0 0.0
  %507 = vmatmul.mubr.f32.gmra.mrb[0].mxu0 %v362
  %v508 = vpop.f32.mrb[0].mxu0
  %v509 = vadd.f32 0.0, %v508
  %v510 = vpop.f32.mrb[0].mxu0
  %511 = vmatprep.mubr.f32.mxu0 0.0
  %512 = vmatmul.mubr.f32.gmra.mrb[0].mxu0 %v363
  %v513 = vpop.f32.mrb[0].mxu0
  %v514 = vadd.f32 0.0, %v513
  %v515 = vpop.f32.mrb[0].mxu0
  %516 = vmatprep.mubr.f32.mxu0 0.0
  %517 = vmatmul.mubr.f32.gmra.mrb[0].mxu0 %v364
  %v518 = vpop.f32.mrb[0].mxu0
  %v519 = vadd.f32 0.0, %v518
  %v520 = vpop.f32.mrb[0].mxu0
  %521 = vmatprep.mubr.f32.mxu0 0.0
  %522 = vmatmul.mubr.f32.gmra.mrb[0].mxu0 %v365
  %v523 = vpop.f32.mrb[0].mxu0
  %v524 = vadd.f32 0.0, %v523
  %v525 = vpop.f32.mrb[0].mxu0
  %526 = vdwg.mxu0
  %v528 = vlaneseq
  %v529 = vshrl.u32 %v528, 7
  %v530 = vsub.s32 0, %v529
  %v531 = vrot.slane %v349, %v530
  %v533 = vadd.f32 %v531, %v449
  %v534 = vadd.f32 %v531, %v454
  %v535 = vadd.f32 %v531, %v459
  %v536 = vadd.f32 %v531, %v464
  %v537 = vadd.f32 %v531, %v469
  %v538 = vadd.f32 %v531, %v474
  %v539 = vadd.f32 %v531, %v479
  %v540 = vadd.f32 %v531, %v484
  %v541 = vadd.f32 %v531, %v489
  %v542 = vadd.f32 %v531, %v494
  %v543 = vadd.f32 %v531, %v499
  %v544 = vadd.f32 %v531, %v504
  %v545 = vadd.f32 %v531, %v509
  %v546 = vadd.f32 %v531, %v514
  %v547 = vadd.f32 %v531, %v519
  %v548 = vadd.f32 %v531, %v524
  %v549 = vrsqrt.pop %v533
  %v550 = vrsqrt.pop %v534
  %v551 = vrsqrt.pop %v535
  %v552 = vrsqrt.pop %v536
  %v553 = vrsqrt.pop %v537
  %v554 = vrsqrt.pop %v538
  %v555 = vrsqrt.pop %v539
  %v556 = vrsqrt.pop %v540
  %v557 = vrsqrt.pop %v541
  %v558 = vrsqrt.pop %v542
  %v559 = vrsqrt.pop %v543
  %v560 = vrsqrt.pop %v544
  %v561 = vrsqrt.pop %v545
  %v562 = vrsqrt.pop %v546
  %v563 = vrsqrt.pop %v547
  %v564 = vrsqrt.pop %v548
  %v565 = vmul.f32 %v287, %v549
  %v566 = vmul.f32 %v290, %v550
  %v567 = vmul.f32 %v295, %v551
  %v568 = vmul.f32 %v298, %v552
  %v569 = vmul.f32 %v303, %v553
  %v570 = vmul.f32 %v306, %v554
  %v571 = vmul.f32 %v311, %v555
  %v572 = vmul.f32 %v314, %v556
  %v573 = vmul.f32 %v319, %v557
  %v574 = vmul.f32 %v322, %v558
  %v575 = vmul.f32 %v327, %v559
  %v576 = vmul.f32 %v330, %v560
  %v577 = vmul.f32 %v335, %v561
  %v578 = vmul.f32 %v338, %v562
  %v579 = vmul.f32 %v343, %v563
  %v580 = vmul.f32 %v346, %v564
  %581 = vst [vmem:[%s5] sm:$0xff] %v565
  %582 = vst [vmem:[%s5 + $0x8] sm:$0xff] %v566
  %583 = vst [vmem:[%s5 + $0x10] sm:$0xff] %v567
  %584 = vst [vmem:[%s5 + $0x18] sm:$0xff] %v568
  %585 = vst [vmem:[%s5 + $0x20] sm:$0xff] %v569
  %586 = vst [vmem:[%s5 + $0x28] sm:$0xff] %v570
  %587 = vst [vmem:[%s5 + $0x30] sm:$0xff] %v571
  %588 = vst [vmem:[%s5 + $0x38] sm:$0xff] %v572
  %589 = vst [vmem:[%s5 + $0x40] sm:$0xff] %v573
  %590 = vst [vmem:[%s5 + $0x48] sm:$0xff] %v574
  %591 = vst [vmem:[%s5 + $0x50] sm:$0xff] %v575
  %592 = vst [vmem:[%s5 + $0x58] sm:$0xff] %v576
  %593 = vst [vmem:[%s5 + $0x60] sm:$0xff] %v577
  %594 = vst [vmem:[%s5 + $0x68] sm:$0xff] %v578
  %595 = vst [vmem:[%s5 + $0x70] sm:$0xff] %v579
  %596 = vst [vmem:[%s5 + $0x78] sm:$0xff] %v580
  // Predicated region
  $region22: #{temporal_prior_encoder.4} parent=0 // pred_check
    _
  $region23: #{temporal_prior_encoder.4} parent=0 // pred_check_branch
    %598 = sbr.rel (0) target = $region25
  $region24: #{temporal_prior_encoder.4} parent=0 // pred_region
    _
  $region25: #{temporal_prior_encoder.4} parent=0 // pred_fallthru
    _
  // Predicated region
  $region26: #{temporal_prior_encoder.4} parent=0 // pred_check
    _
  $region27: #{temporal_prior_encoder.4} parent=0 // pred_check_branch
    %600 = sbr.rel (0) target = $region29
  $region28: #{temporal_prior_encoder.4} parent=0 // pred_region
    _
  $region29: #{temporal_prior_encoder.4} parent=0 // pred_fallthru
    _

// kernel: temporal_prior_encoder.5
$region0: #{temporal_prior_encoder.5}
  #allocation0 [shape = 'u32[]', space=smem, size = 0x4, offset = 0x4, fixed_abs, tag = 'smem constant byte address 0x4 - core index']
  #allocation1 [shape = 'u32[144,128]{1,0:T(1,128)}', space=vmem, size = 0x12000, scoped, tag = 'internal scratch']
  %s0 = inlined_call_operand.vmem [shape: bf16[32,256], index: 0, kind: input, shape index: {}]
  %s1 = inlined_call_operand.vmem [shape: bf16[256,128], index: 1, kind: input, shape index: {}]
  %s2 = inlined_call_operand.vmem [shape: f32[1,128], index: 2, kind: input, shape index: {}]
  %s3 = inlined_call_operand.vmem [shape: f32[128,128], index: 3, kind: input, shape index: {}]
  %s4 = inlined_call_operand.vmem [shape: f32[1,128], index: 4, kind: input, shape index: {}]
  %s5 = inlined_call_operand.vmem [shape: f32[32,128], index: 5, kind: output, shape index: {}]
  %s6 = sld [smem:[#allocation0]]
  $region30: #{temporal_prior_encoder.5} parent=0
    _
  %s8 = ssub.s32 1, %s6
  %s9 = scalar_select 0, %s8, %s6
  // Predicated region
  $region2: #{temporal_prior_encoder.5} parent=0 // pred_check
    _
  $region3: #{temporal_prior_encoder.5} parent=0 // pred_check_branch
    %11 = sbr.rel (0) target = $region5
  $region4: #{temporal_prior_encoder.5} parent=0 // pred_region
    _
  $region5: #{temporal_prior_encoder.5} parent=0 // pred_fallthru
    _
  // Predicated region
  $region6: #{temporal_prior_encoder.5} parent=0 // pred_check
    _
  $region7: #{temporal_prior_encoder.5} parent=0 // pred_check_branch
    %13 = sbr.rel (0) target = $region9
  $region8: #{temporal_prior_encoder.5} parent=0 // pred_region
    _
  $region9: #{temporal_prior_encoder.5} parent=0 // pred_fallthru
    _
  // Predicated region
  $region10: #{temporal_prior_encoder.5} parent=0 // pred_check
    _
  $region11: #{temporal_prior_encoder.5} parent=0 // pred_check_branch
    %15 = sbr.rel (0) target = $region13
  $region12: #{temporal_prior_encoder.5} parent=0 // pred_region
    _
  $region13: #{temporal_prior_encoder.5} parent=0 // pred_fallthru
    _
  // Predicated region
  $region14: #{temporal_prior_encoder.5} parent=0 // pred_check
    _
  $region15: #{temporal_prior_encoder.5} parent=0 // pred_check_branch
    %17 = sbr.rel (0) target = $region17
  $region16: #{temporal_prior_encoder.5} parent=0 // pred_region
    _
  $region17: #{temporal_prior_encoder.5} parent=0 // pred_fallthru
    _
  // Predicated region
  $region18: #{temporal_prior_encoder.5} parent=0 // pred_check
    _
  $region19: #{temporal_prior_encoder.5} parent=0 // pred_check_branch
    %19 = sbr.rel (0) target = $region21
  $region20: #{temporal_prior_encoder.5} parent=0 // pred_region
    _
  $region21: #{temporal_prior_encoder.5} parent=0 // pred_fallthru
    _
  %v21 = vld [vmem:[%s0] sm:$0xff]
  %v22 = vld [vmem:[%s0 + $0x8] sm:$0xff]
  %v23 = vld [vmem:[%s0 + $0x10] sm:$0xff]
  %v24 = vld [vmem:[%s0 + $0x18] sm:$0xff]
  %v25 = vld [vmem:[%s1] sm:$0xf]
  %v26 = vld [vmem:[%s1 + $0x4] sm:$0xf]
  %v27 = vld [vmem:[%s1 + $0x8] sm:$0xf]
  %v28 = vld [vmem:[%s1 + $0xc] sm:$0xf]
  %v29 = vld [vmem:[%s1 + $0x10] sm:$0xf]
  %v30 = vld [vmem:[%s1 + $0x14] sm:$0xf]
  %v31 = vld [vmem:[%s1 + $0x18] sm:$0xf]
  %v32 = vld [vmem:[%s1 + $0x1c] sm:$0xf]
  %v33 = vld [vmem:[%s1 + $0x20] sm:$0xf]
  %v34 = vld [vmem:[%s1 + $0x24] sm:$0xf]
  %v35 = vld [vmem:[%s1 + $0x28] sm:$0xf]
  %v36 = vld [vmem:[%s1 + $0x2c] sm:$0xf]
  %v37 = vld [vmem:[%s1 + $0x30] sm:$0xf]
  %v38 = vld [vmem:[%s1 + $0x34] sm:$0xf]
  %v39 = vld [vmem:[%s1 + $0x38] sm:$0xf]
  %v40 = vld [vmem:[%s1 + $0x3c] sm:$0xf]
  %v41 = vld [vmem:[%s1 + $0x40] sm:$0xf]
  %v42 = vld [vmem:[%s1 + $0x44] sm:$0xf]
  %v43 = vld [vmem:[%s1 + $0x48] sm:$0xf]
  %v44 = vld [vmem:[%s1 + $0x4c] sm:$0xf]
  %v45 = vld [vmem:[%s1 + $0x50] sm:$0xf]
  %v46 = vld [vmem:[%s1 + $0x54] sm:$0xf]
  %v47 = vld [vmem:[%s1 + $0x58] sm:$0xf]
  %v48 = vld [vmem:[%s1 + $0x5c] sm:$0xf]
  %v49 = vld [vmem:[%s1 + $0x60] sm:$0xf]
  %v50 = vld [vmem:[%s1 + $0x64] sm:$0xf]
  %v51 = vld [vmem:[%s1 + $0x68] sm:$0xf]
  %v52 = vld [vmem:[%s1 + $0x6c] sm:$0xf]
  %v53 = vld [vmem:[%s1 + $0x70] sm:$0xf]
  %v54 = vld [vmem:[%s1 + $0x74] sm:$0xf]
  %v55 = vld [vmem:[%s1 + $0x78] sm:$0xf]
  %v56 = vld [vmem:[%s1 + $0x7c] sm:$0xf]
  %v57 = vld [vmem:[%s2] sm:$0x1]
  %v59 = vlaneseq
  %v60 = vshrl.u32 %v59, 7
  %v61 = vsub.s32 0, %v60
  %v62 = vrot.slane %v57, %v61
  %v68 = vunpack.c.l.b16 %v21
  %v69 = vunpack.c.h.b16 %v21
  %v70 = vunpack.c.l.b16 %v22
  %v71 = vunpack.c.h.b16 %v22
  %v72 = vunpack.c.l.b16 %v23
  %v73 = vunpack.c.h.b16 %v23
  %v74 = vunpack.c.l.b16 %v24
  %v75 = vunpack.c.h.b16 %v24
  %v76 = vpack.c.b16 %v70, %v68
  %v77 = vpack.c.b16 %v71, %v69
  %v78 = vpack.c.b16 %v74, %v72
  %v79 = vpack.c.b16 %v75, %v73
  %v116 = vunpack.c.l.b16 %v25
  %v117 = vunpack.c.l.b16 %v26
  %v118 = vunpack.c.l.b16 %v27
  %v119 = vunpack.c.l.b16 %v28
  %v120 = vunpack.c.l.b16 %v29
  %v121 = vunpack.c.l.b16 %v30
  %v122 = vunpack.c.l.b16 %v31
  %v123 = vunpack.c.l.b16 %v32
  %v124 = vunpack.c.l.b16 %v33
  %v125 = vunpack.c.l.b16 %v34
  %v126 = vunpack.c.l.b16 %v35
  %v127 = vunpack.c.l.b16 %v36
  %v128 = vunpack.c.l.b16 %v37
  %v129 = vunpack.c.l.b16 %v38
  %v130 = vunpack.c.l.b16 %v39
  %v131 = vunpack.c.l.b16 %v40
  %v132 = vunpack.c.l.b16 %v41
  %v133 = vunpack.c.l.b16 %v42
  %v134 = vunpack.c.l.b16 %v43
  %v135 = vunpack.c.l.b16 %v44
  %v136 = vunpack.c.l.b16 %v45
  %v137 = vunpack.c.l.b16 %v46
  %v138 = vunpack.c.l.b16 %v47
  %v139 = vunpack.c.l.b16 %v48
  %v140 = vunpack.c.l.b16 %v49
  %v141 = vunpack.c.l.b16 %v50
  %v142 = vunpack.c.l.b16 %v51
  %v143 = vunpack.c.l.b16 %v52
  %v144 = vunpack.c.l.b16 %v53
  %v145 = vunpack.c.l.b16 %v54
  %v146 = vunpack.c.l.b16 %v55
  %v147 = vunpack.c.l.b16 %v56
  %v148 = vpack.c.b16 %v117, %v116
  %v149 = vpack.c.b16 %v119, %v118
  %v150 = vpack.c.b16 %v121, %v120
  %v151 = vpack.c.b16 %v123, %v122
  %v152 = vpack.c.b16 %v125, %v124
  %v153 = vpack.c.b16 %v127, %v126
  %v154 = vpack.c.b16 %v129, %v128
  %v155 = vpack.c.b16 %v131, %v130
  %v156 = vpack.c.b16 %v133, %v132
  %v157 = vpack.c.b16 %v135, %v134
  %v158 = vpack.c.b16 %v137, %v136
  %v159 = vpack.c.b16 %v139, %v138
  %v160 = vpack.c.b16 %v141, %v140
  %v161 = vpack.c.b16 %v143, %v142
  %v162 = vpack.c.b16 %v145, %v144
  %v163 = vpack.c.b16 %v147, %v146
  %180 = vmatprep.subr.bf16.mxu0 0
  %181 = vmatpush1.bf16.msra.mxu0 %v148
  %182 = vmatprep.subr.bf16.mxu0 0
  %183 = vmatpush1.bf16.msra.mxu0 %v149
  %184 = vmatprep.subr.bf16.mxu0 0
  %185 = vmatpush1.bf16.msra.mxu0 %v150
  %186 = vmatprep.subr.bf16.mxu0 0
  %187 = vmatpush1.bf16.msra.mxu0 %v151
  %188 = vmatprep.subr.bf16.mxu0 0
  %189 = vmatpush1.bf16.msra.mxu0 %v152
  %190 = vmatprep.subr.bf16.mxu0 0
  %191 = vmatpush1.bf16.msra.mxu0 %v153
  %192 = vmatprep.subr.bf16.mxu0 0
  %193 = vmatpush1.bf16.msra.mxu0 %v154
  %194 = vmatprep.subr.bf16.mxu0 0
  %195 = vmatpush1.bf16.msra.mxu0 %v155
  %196 = vmatprep.subr.bf16.mxu0 0
  %197 = vmatpush1.bf16.msra.mxu0 %v156
  %198 = vmatprep.subr.bf16.mxu0 0
  %199 = vmatpush1.bf16.msra.mxu0 %v157
  %200 = vmatprep.subr.bf16.mxu0 0
  %201 = vmatpush1.bf16.msra.mxu0 %v158
  %202 = vmatprep.subr.bf16.mxu0 0
  %203 = vmatpush1.bf16.msra.mxu0 %v159
  %204 = vmatprep.subr.bf16.mxu0 0
  %205 = vmatpush1.bf16.msra.mxu0 %v160
  %206 = vmatprep.subr.bf16.mxu0 0
  %207 = vmatpush1.bf16.msra.mxu0 %v161
  %208 = vmatprep.subr.bf16.mxu0 0
  %209 = vmatpush1.bf16.msra.mxu0 %v162
  %210 = vmatprep.subr.bf16.mxu0 0
  %211 = vmatpush1.bf16.msra.mxu0 %v163
  %212 = vmatprep.mubr.bf16.mxu0 %v77
  %213 = vmatmul.mubr.bf16.gmra.mrb[0].mxu0 %v76
  %v214 = vpop.f32.mrb[0].mxu0
  %v215 = vadd.f32 %v62, %v214
  %v216 = vpop.f32.mrb[0].mxu0
  %v217 = vpop.f32.mrb[0].mxu0
  %v218 = vadd.f32 %v62, %v217
  %v219 = vpop.f32.mrb[0].mxu0
  %220 = vmatprep.mubr.bf16.mxu0 %v79
  %221 = vmatmul.mubr.bf16.gmra.mrb[0].mxu0 %v78
  %v222 = vpop.f32.mrb[0].mxu0
  %v223 = vadd.f32 %v62, %v222
  %v224 = vpop.f32.mrb[0].mxu0
  %v225 = vpop.f32.mrb[0].mxu0
  %v226 = vadd.f32 %v62, %v225
  %v227 = vpop.f32.mrb[0].mxu0
  %228 = vdwg.mxu0
  %v229 = vld [vmem:[%s4] sm:$0x1]
  %v230 = vmul.f32 %v215, %v215
  %v231 = vmul.f32 %v218, %v218
  %v232 = vmul.f32 %v223, %v223
  %v233 = vmul.f32 %v226, %v226
  %v234 = vld [vmem:[%s3] sm:$0xff]
  %v235 = vld [vmem:[%s3 + $0x8] sm:$0xff]
  %v236 = vld [vmem:[%s3 + $0x10] sm:$0xff]
  %v237 = vld [vmem:[%s3 + $0x18] sm:$0xff]
  %v238 = vld [vmem:[%s3 + $0x20] sm:$0xff]
  %v239 = vld [vmem:[%s3 + $0x28] sm:$0xff]
  %v240 = vld [vmem:[%s3 + $0x30] sm:$0xff]
  %v241 = vld [vmem:[%s3 + $0x38] sm:$0xff]
  %v242 = vld [vmem:[%s3 + $0x40] sm:$0xff]
  %v243 = vld [vmem:[%s3 + $0x48] sm:$0xff]
  %v244 = vld [vmem:[%s3 + $0x50] sm:$0xff]
  %v245 = vld [vmem:[%s3 + $0x58] sm:$0xff]
  %v246 = vld [vmem:[%s3 + $0x60] sm:$0xff]
  %v247 = vld [vmem:[%s3 + $0x68] sm:$0xff]
  %v248 = vld [vmem:[%s3 + $0x70] sm:$0xff]
  %v249 = vld [vmem:[%s3 + $0x78] sm:$0xff]
  %250 = vmatprep.subr.mxu0 0.0
  %251 = vmatpush1.msra.mxu0 %v234
  %252 = vmatprep.subr.mxu0 0.0
  %253 = vmatpush1.msra.mxu0 %v235
  %254 = vmatprep.subr.mxu0 0.0
  %255 = vmatpush1.msra.mxu0 %v236
  %256 = vmatprep.subr.mxu0 0.0
  %257 = vmatpush1.msra.mxu0 %v237
  %258 = vmatprep.subr.mxu0 0.0
  %259 = vmatpush1.msra.mxu0 %v238
  %260 = vmatprep.subr.mxu0 0.0
  %261 = vmatpush1.msra.mxu0 %v239
  %262 = vmatprep.subr.mxu0 0.0
  %263 = vmatpush1.msra.mxu0 %v240
  %264 = vmatprep.subr.mxu0 0.0
  %265 = vmatpush1.msra.mxu0 %v241
  %266 = vmatprep.subr.mxu0 0.0
  %267 = vmatpush1.msra.mxu0 %v242
  %268 = vmatprep.subr.mxu0 0.0
  %269 = vmatpush1.msra.mxu0 %v243
  %270 = vmatprep.subr.mxu0 0.0
  %271 = vmatpush1.msra.mxu0 %v244
  %272 = vmatprep.subr.mxu0 0.0
  %273 = vmatpush1.msra.mxu0 %v245
  %274 = vmatprep.subr.mxu0 0.0
  %275 = vmatpush1.msra.mxu0 %v246
  %276 = vmatprep.subr.mxu0 0.0
  %277 = vmatpush1.msra.mxu0 %v247
  %278 = vmatprep.subr.mxu0 0.0
  %279 = vmatpush1.msra.mxu0 %v248
  %280 = vmatprep.subr.mxu0 0.0
  %281 = vmatpush1.msra.mxu0 %v249
  %282 = vmatprep.subr.mxu0 0.0
  %283 = vmatpush1.msra.mxu0 0.0
  %284 = vmatprep.subr.mxu0 0.0
  %285 = vmatpush1.msra.mxu0 0.0
  %286 = vmatprep.subr.mxu0 0.0
  %287 = vmatpush1.msra.mxu0 0.0
  %288 = vmatprep.subr.mxu0 0.0
  %289 = vmatpush1.msra.mxu0 0.0
  %290 = vmatprep.subr.mxu0 0.0
  %291 = vmatpush1.msra.mxu0 0.0
  %292 = vmatprep.subr.mxu0 0.0
  %293 = vmatpush1.msra.mxu0 0.0
  %294 = vmatprep.subr.mxu0 0.0
  %295 = vmatpush1.msra.mxu0 0.0
  %296 = vmatprep.subr.mxu0 0.0
  %297 = vmatpush1.msra.mxu0 0.0
  %298 = vmatprep.subr.mxu0 0.0
  %299 = vmatpush1.msra.mxu0 0.0
  %300 = vmatprep.subr.mxu0 0.0
  %301 = vmatpush1.msra.mxu0 0.0
  %302 = vmatprep.subr.mxu0 0.0
  %303 = vmatpush1.msra.mxu0 0.0
  %304 = vmatprep.subr.mxu0 0.0
  %305 = vmatpush1.msra.mxu0 0.0
  %306 = vmatprep.subr.mxu0 0.0
  %307 = vmatpush1.msra.mxu0 0.0
  %308 = vmatprep.subr.mxu0 0.0
  %309 = vmatpush1.msra.mxu0 0.0
  %310 = vmatprep.subr.mxu0 0.0
  %311 = vmatpush1.msra.mxu0 0.0
  %312 = vmatprep.subr.mxu0 0.0
  %313 = vmatpush1.msra.mxu0 0.0
  %314 = vmatprep.mubr.f32.mxu0 0.0
  %315 = vmatmul.mubr.f32.gmra.mrb[0].mxu0 %v230
  %v316 = vpop.f32.mrb[0].mxu0
  %v317 = vadd.f32 0.0, %v316
  %v318 = vpop.f32.mrb[0].mxu0
  %319 = vmatprep.mubr.f32.mxu0 0.0
  %320 = vmatmul.mubr.f32.gmra.mrb[0].mxu0 %v231
  %v321 = vpop.f32.mrb[0].mxu0
  %v322 = vadd.f32 0.0, %v321
  %v323 = vpop.f32.mrb[0].mxu0
  %324 = vmatprep.mubr.f32.mxu0 0.0
  %325 = vmatmul.mubr.f32.gmra.mrb[0].mxu0 %v232
  %v326 = vpop.f32.mrb[0].mxu0
  %v327 = vadd.f32 0.0, %v326
  %v328 = vpop.f32.mrb[0].mxu0
  %329 = vmatprep.mubr.f32.mxu0 0.0
  %330 = vmatmul.mubr.f32.gmra.mrb[0].mxu0 %v233
  %v331 = vpop.f32.mrb[0].mxu0
  %v332 = vadd.f32 0.0, %v331
  %v333 = vpop.f32.mrb[0].mxu0
  %334 = vdwg.mxu0
  %v336 = vlaneseq
  %v337 = vshrl.u32 %v336, 7
  %v338 = vsub.s32 0, %v337
  %v339 = vrot.slane %v229, %v338
  %v341 = vadd.f32 %v339, %v317
  %v342 = vadd.f32 %v339, %v322
  %v343 = vadd.f32 %v339, %v327
  %v344 = vadd.f32 %v339, %v332
  %v345 = vrsqrt.pop %v341
  %v346 = vrsqrt.pop %v342
  %v347 = vrsqrt.pop %v343
  %v348 = vrsqrt.pop %v344
  %v349 = vmul.f32 %v215, %v345
  %v350 = vmul.f32 %v218, %v346
  %v351 = vmul.f32 %v223, %v347
  %v352 = vmul.f32 %v226, %v348
  %353 = vst [vmem:[%s5] sm:$0xff] %v349
  %354 = vst [vmem:[%s5 + $0x8] sm:$0xff] %v350
  %355 = vst [vmem:[%s5 + $0x10] sm:$0xff] %v351
  %356 = vst [vmem:[%s5 + $0x18] sm:$0xff] %v352
  // Predicated region
  $region22: #{temporal_prior_encoder.5} parent=0 // pred_check
    _
  $region23: #{temporal_prior_encoder.5} parent=0 // pred_check_branch
    %358 = sbr.rel (0) target = $region25
  $region24: #{temporal_prior_encoder.5} parent=0 // pred_region
    _
  $region25: #{temporal_prior_encoder.5} parent=0 // pred_fallthru
    _
  // Predicated region
  $region26: #{temporal_prior_encoder.5} parent=0 // pred_check
    _
  $region27: #{temporal_prior_encoder.5} parent=0 // pred_check_branch
    %360 = sbr.rel (0) target = $region29
  $region28: #{temporal_prior_encoder.5} parent=0 // pred_region
    _
  $region29: #{temporal_prior_encoder.5} parent=0 // pred_fallthru
    _

// kernel: temporal_prior_encoder.6
$region0: #{temporal_prior_encoder.6}
  #allocation0 [shape = 'u32[]', space=smem, size = 0x4, offset = 0x4, fixed_abs, tag = 'smem constant byte address 0x4 - core index']
  #allocation1 [shape = 'u32[144,128]{1,0:T(1,128)}', space=vmem, size = 0x12000, scoped, tag = 'internal scratch']
  %s0 = inlined_call_operand.vmem [shape: bf16[16,256], index: 0, kind: input, shape index: {}]
  %s1 = inlined_call_operand.vmem [shape: bf16[256,128], index: 1, kind: input, shape index: {}]
  %s2 = inlined_call_operand.vmem [shape: f32[1,128], index: 2, kind: input, shape index: {}]
  %s3 = inlined_call_operand.vmem [shape: f32[128,128], index: 3, kind: input, shape index: {}]
  %s4 = inlined_call_operand.vmem [shape: f32[1,128], index: 4, kind: input, shape index: {}]
  %s5 = inlined_call_operand.vmem [shape: f32[16,128], index: 5, kind: output, shape index: {}]
  %s6 = sld [smem:[#allocation0]]
  $region30: #{temporal_prior_encoder.6} parent=0
    _
  %s8 = ssub.s32 1, %s6
  %s9 = scalar_select 0, %s8, %s6
  // Predicated region
  $region2: #{temporal_prior_encoder.6} parent=0 // pred_check
    _
  $region3: #{temporal_prior_encoder.6} parent=0 // pred_check_branch
    %11 = sbr.rel (0) target = $region5
  $region4: #{temporal_prior_encoder.6} parent=0 // pred_region
    _
  $region5: #{temporal_prior_encoder.6} parent=0 // pred_fallthru
    _
  // Predicated region
  $region6: #{temporal_prior_encoder.6} parent=0 // pred_check
    _
  $region7: #{temporal_prior_encoder.6} parent=0 // pred_check_branch
    %13 = sbr.rel (0) target = $region9
  $region8: #{temporal_prior_encoder.6} parent=0 // pred_region
    _
  $region9: #{temporal_prior_encoder.6} parent=0 // pred_fallthru
    _
  // Predicated region
  $region10: #{temporal_prior_encoder.6} parent=0 // pred_check
    _
  $region11: #{temporal_prior_encoder.6} parent=0 // pred_check_branch
    %15 = sbr.rel (0) target = $region13
  $region12: #{temporal_prior_encoder.6} parent=0 // pred_region
    _
  $region13: #{temporal_prior_encoder.6} parent=0 // pred_fallthru
    _
  // Predicated region
  $region14: #{temporal_prior_encoder.6} parent=0 // pred_check
    _
  $region15: #{temporal_prior_encoder.6} parent=0 // pred_check_branch
    %17 = sbr.rel (0) target = $region17
  $region16: #{temporal_prior_encoder.6} parent=0 // pred_region
    _
  $region17: #{temporal_prior_encoder.6} parent=0 // pred_fallthru
    _
  // Predicated region
  $region18: #{temporal_prior_encoder.6} parent=0 // pred_check
    _
  $region19: #{temporal_prior_encoder.6} parent=0 // pred_check_branch
    %19 = sbr.rel (0) target = $region21
  $region20: #{temporal_prior_encoder.6} parent=0 // pred_region
    _
  $region21: #{temporal_prior_encoder.6} parent=0 // pred_fallthru
    _
  %v21 = vld [vmem:[%s0] sm:$0xff]
  %v22 = vld [vmem:[%s0 + $0x8] sm:$0xff]
  %v23 = vld [vmem:[%s1] sm:$0xf]
  %v24 = vld [vmem:[%s1 + $0x4] sm:$0xf]
  %v25 = vld [vmem:[%s1 + $0x8] sm:$0xf]
  %v26 = vld [vmem:[%s1 + $0xc] sm:$0xf]
  %v27 = vld [vmem:[%s1 + $0x10] sm:$0xf]
  %v28 = vld [vmem:[%s1 + $0x14] sm:$0xf]
  %v29 = vld [vmem:[%s1 + $0x18] sm:$0xf]
  %v30 = vld [vmem:[%s1 + $0x1c] sm:$0xf]
  %v31 = vld [vmem:[%s1 + $0x20] sm:$0xf]
  %v32 = vld [vmem:[%s1 + $0x24] sm:$0xf]
  %v33 = vld [vmem:[%s1 + $0x28] sm:$0xf]
  %v34 = vld [vmem:[%s1 + $0x2c] sm:$0xf]
  %v35 = vld [vmem:[%s1 + $0x30] sm:$0xf]
  %v36 = vld [vmem:[%s1 + $0x34] sm:$0xf]
  %v37 = vld [vmem:[%s1 + $0x38] sm:$0xf]
  %v38 = vld [vmem:[%s1 + $0x3c] sm:$0xf]
  %v39 = vld [vmem:[%s1 + $0x40] sm:$0xf]
  %v40 = vld [vmem:[%s1 + $0x44] sm:$0xf]
  %v41 = vld [vmem:[%s1 + $0x48] sm:$0xf]
  %v42 = vld [vmem:[%s1 + $0x4c] sm:$0xf]
  %v43 = vld [vmem:[%s1 + $0x50] sm:$0xf]
  %v44 = vld [vmem:[%s1 + $0x54] sm:$0xf]
  %v45 = vld [vmem:[%s1 + $0x58] sm:$0xf]
  %v46 = vld [vmem:[%s1 + $0x5c] sm:$0xf]
  %v47 = vld [vmem:[%s1 + $0x60] sm:$0xf]
  %v48 = vld [vmem:[%s1 + $0x64] sm:$0xf]
  %v49 = vld [vmem:[%s1 + $0x68] sm:$0xf]
  %v50 = vld [vmem:[%s1 + $0x6c] sm:$0xf]
  %v51 = vld [vmem:[%s1 + $0x70] sm:$0xf]
  %v52 = vld [vmem:[%s1 + $0x74] sm:$0xf]
  %v53 = vld [vmem:[%s1 + $0x78] sm:$0xf]
  %v54 = vld [vmem:[%s1 + $0x7c] sm:$0xf]
  %v55 = vld [vmem:[%s2] sm:$0x1]
  %v57 = vlaneseq
  %v58 = vshrl.u32 %v57, 7
  %v59 = vsub.s32 0, %v58
  %v60 = vrot.slane %v55, %v59
  %v64 = vunpack.c.l.b16 %v21
  %v65 = vunpack.c.h.b16 %v21
  %v66 = vunpack.c.l.b16 %v22
  %v67 = vunpack.c.h.b16 %v22
  %v68 = vpack.c.b16 %v66, %v64
  %v69 = vpack.c.b16 %v67, %v65
  %v104 = vunpack.c.l.b16 %v23
  %v105 = vunpack.c.l.b16 %v24
  %v106 = vunpack.c.l.b16 %v25
  %v107 = vunpack.c.l.b16 %v26
  %v108 = vunpack.c.l.b16 %v27
  %v109 = vunpack.c.l.b16 %v28
  %v110 = vunpack.c.l.b16 %v29
  %v111 = vunpack.c.l.b16 %v30
  %v112 = vunpack.c.l.b16 %v31
  %v113 = vunpack.c.l.b16 %v32
  %v114 = vunpack.c.l.b16 %v33
  %v115 = vunpack.c.l.b16 %v34
  %v116 = vunpack.c.l.b16 %v35
  %v117 = vunpack.c.l.b16 %v36
  %v118 = vunpack.c.l.b16 %v37
  %v119 = vunpack.c.l.b16 %v38
  %v120 = vunpack.c.l.b16 %v39
  %v121 = vunpack.c.l.b16 %v40
  %v122 = vunpack.c.l.b16 %v41
  %v123 = vunpack.c.l.b16 %v42
  %v124 = vunpack.c.l.b16 %v43
  %v125 = vunpack.c.l.b16 %v44
  %v126 = vunpack.c.l.b16 %v45
  %v127 = vunpack.c.l.b16 %v46
  %v128 = vunpack.c.l.b16 %v47
  %v129 = vunpack.c.l.b16 %v48
  %v130 = vunpack.c.l.b16 %v49
  %v131 = vunpack.c.l.b16 %v50
  %v132 = vunpack.c.l.b16 %v51
  %v133 = vunpack.c.l.b16 %v52
  %v134 = vunpack.c.l.b16 %v53
  %v135 = vunpack.c.l.b16 %v54
  %v136 = vpack.c.b16 %v105, %v104
  %v137 = vpack.c.b16 %v107, %v106
  %v138 = vpack.c.b16 %v109, %v108
  %v139 = vpack.c.b16 %v111, %v110
  %v140 = vpack.c.b16 %v113, %v112
  %v141 = vpack.c.b16 %v115, %v114
  %v142 = vpack.c.b16 %v117, %v116
  %v143 = vpack.c.b16 %v119, %v118
  %v144 = vpack.c.b16 %v121, %v120
  %v145 = vpack.c.b16 %v123, %v122
  %v146 = vpack.c.b16 %v125, %v124
  %v147 = vpack.c.b16 %v127, %v126
  %v148 = vpack.c.b16 %v129, %v128
  %v149 = vpack.c.b16 %v131, %v130
  %v150 = vpack.c.b16 %v133, %v132
  %v151 = vpack.c.b16 %v135, %v134
  %168 = vmatprep.subr.bf16.mxu0 0
  %169 = vmatpush1.bf16.msra.mxu0 %v136
  %170 = vmatprep.subr.bf16.mxu0 0
  %171 = vmatpush1.bf16.msra.mxu0 %v137
  %172 = vmatprep.subr.bf16.mxu0 0
  %173 = vmatpush1.bf16.msra.mxu0 %v138
  %174 = vmatprep.subr.bf16.mxu0 0
  %175 = vmatpush1.bf16.msra.mxu0 %v139
  %176 = vmatprep.subr.bf16.mxu0 0
  %177 = vmatpush1.bf16.msra.mxu0 %v140
  %178 = vmatprep.subr.bf16.mxu0 0
  %179 = vmatpush1.bf16.msra.mxu0 %v141
  %180 = vmatprep.subr.bf16.mxu0 0
  %181 = vmatpush1.bf16.msra.mxu0 %v142
  %182 = vmatprep.subr.bf16.mxu0 0
  %183 = vmatpush1.bf16.msra.mxu0 %v143
  %184 = vmatprep.subr.bf16.mxu0 0
  %185 = vmatpush1.bf16.msra.mxu0 %v144
  %186 = vmatprep.subr.bf16.mxu0 0
  %187 = vmatpush1.bf16.msra.mxu0 %v145
  %188 = vmatprep.subr.bf16.mxu0 0
  %189 = vmatpush1.bf16.msra.mxu0 %v146
  %190 = vmatprep.subr.bf16.mxu0 0
  %191 = vmatpush1.bf16.msra.mxu0 %v147
  %192 = vmatprep.subr.bf16.mxu0 0
  %193 = vmatpush1.bf16.msra.mxu0 %v148
  %194 = vmatprep.subr.bf16.mxu0 0
  %195 = vmatpush1.bf16.msra.mxu0 %v149
  %196 = vmatprep.subr.bf16.mxu0 0
  %197 = vmatpush1.bf16.msra.mxu0 %v150
  %198 = vmatprep.subr.bf16.mxu0 0
  %199 = vmatpush1.bf16.msra.mxu0 %v151
  %200 = vmatprep.mubr.bf16.mxu0 %v69
  %201 = vmatmul.mubr.bf16.gmra.mrb[0].mxu0 %v68
  %v202 = vpop.f32.mrb[0].mxu0
  %v203 = vadd.f32 %v60, %v202
  %v204 = vpop.f32.mrb[0].mxu0
  %v205 = vpop.f32.mrb[0].mxu0
  %v206 = vadd.f32 %v60, %v205
  %v207 = vpop.f32.mrb[0].mxu0
  %208 = vdwg.mxu0
  %v209 = vld [vmem:[%s4] sm:$0x1]
  %v210 = vmul.f32 %v203, %v203
  %v211 = vmul.f32 %v206, %v206
  %v212 = vld [vmem:[%s3] sm:$0xff]
  %v213 = vld [vmem:[%s3 + $0x8] sm:$0xff]
  %v214 = vld [vmem:[%s3 + $0x10] sm:$0xff]
  %v215 = vld [vmem:[%s3 + $0x18] sm:$0xff]
  %v216 = vld [vmem:[%s3 + $0x20] sm:$0xff]
  %v217 = vld [vmem:[%s3 + $0x28] sm:$0xff]
  %v218 = vld [vmem:[%s3 + $0x30] sm:$0xff]
  %v219 = vld [vmem:[%s3 + $0x38] sm:$0xff]
  %v220 = vld [vmem:[%s3 + $0x40] sm:$0xff]
  %v221 = vld [vmem:[%s3 + $0x48] sm:$0xff]
  %v222 = vld [vmem:[%s3 + $0x50] sm:$0xff]
  %v223 = vld [vmem:[%s3 + $0x58] sm:$0xff]
  %v224 = vld [vmem:[%s3 + $0x60] sm:$0xff]
  %v225 = vld [vmem:[%s3 + $0x68] sm:$0xff]
  %v226 = vld [vmem:[%s3 + $0x70] sm:$0xff]
  %v227 = vld [vmem:[%s3 + $0x78] sm:$0xff]
  %228 = vmatprep.subr.mxu0 0.0
  %229 = vmatpush1.msra.mxu0 %v212
  %230 = vmatprep.subr.mxu0 0.0
  %231 = vmatpush1.msra.mxu0 %v213
  %232 = vmatprep.subr.mxu0 0.0
  %233 = vmatpush1.msra.mxu0 %v214
  %234 = vmatprep.subr.mxu0 0.0
  %235 = vmatpush1.msra.mxu0 %v215
  %236 = vmatprep.subr.mxu0 0.0
  %237 = vmatpush1.msra.mxu0 %v216
  %238 = vmatprep.subr.mxu0 0.0
  %239 = vmatpush1.msra.mxu0 %v217
  %240 = vmatprep.subr.mxu0 0.0
  %241 = vmatpush1.msra.mxu0 %v218
  %242 = vmatprep.subr.mxu0 0.0
  %243 = vmatpush1.msra.mxu0 %v219
  %244 = vmatprep.subr.mxu0 0.0
  %245 = vmatpush1.msra.mxu0 %v220
  %246 = vmatprep.subr.mxu0 0.0
  %247 = vmatpush1.msra.mxu0 %v221
  %248 = vmatprep.subr.mxu0 0.0
  %249 = vmatpush1.msra.mxu0 %v222
  %250 = vmatprep.subr.mxu0 0.0
  %251 = vmatpush1.msra.mxu0 %v223
  %252 = vmatprep.subr.mxu0 0.0
  %253 = vmatpush1.msra.mxu0 %v224
  %254 = vmatprep.subr.mxu0 0.0
  %255 = vmatpush1.msra.mxu0 %v225
  %256 = vmatprep.subr.mxu0 0.0
  %257 = vmatpush1.msra.mxu0 %v226
  %258 = vmatprep.subr.mxu0 0.0
  %259 = vmatpush1.msra.mxu0 %v227
  %260 = vmatprep.subr.mxu0 0.0
  %261 = vmatpush1.msra.mxu0 0.0
  %262 = vmatprep.subr.mxu0 0.0
  %263 = vmatpush1.msra.mxu0 0.0
  %264 = vmatprep.subr.mxu0 0.0
  %265 = vmatpush1.msra.mxu0 0.0
  %266 = vmatprep.subr.mxu0 0.0
  %267 = vmatpush1.msra.mxu0 0.0
  %268 = vmatprep.subr.mxu0 0.0
  %269 = vmatpush1.msra.mxu0 0.0
  %270 = vmatprep.subr.mxu0 0.0
  %271 = vmatpush1.msra.mxu0 0.0
  %272 = vmatprep.subr.mxu0 0.0
  %273 = vmatpush1.msra.mxu0 0.0
  %274 = vmatprep.subr.mxu0 0.0
  %275 = vmatpush1.msra.mxu0 0.0
  %276 = vmatprep.subr.mxu0 0.0
  %277 = vmatpush1.msra.mxu0 0.0
  %278 = vmatprep.subr.mxu0 0.0
  %279 = vmatpush1.msra.mxu0 0.0
  %280 = vmatprep.subr.mxu0 0.0
  %281 = vmatpush1.msra.mxu0 0.0
  %282 = vmatprep.subr.mxu0 0.0
  %283 = vmatpush1.msra.mxu0 0.0
  %284 = vmatprep.subr.mxu0 0.0
  %285 = vmatpush1.msra.mxu0 0.0
  %286 = vmatprep.subr.mxu0 0.0
  %287 = vmatpush1.msra.mxu0 0.0
  %288 = vmatprep.subr.mxu0 0.0
  %289 = vmatpush1.msra.mxu0 0.0
  %290 = vmatprep.subr.mxu0 0.0
  %291 = vmatpush1.msra.mxu0 0.0
  %292 = vmatprep.mubr.f32.mxu0 0.0
  %293 = vmatmul.mubr.f32.gmra.mrb[0].mxu0 %v210
  %v294 = vpop.f32.mrb[0].mxu0
  %v295 = vadd.f32 0.0, %v294
  %v296 = vpop.f32.mrb[0].mxu0
  %297 = vmatprep.mubr.f32.mxu0 0.0
  %298 = vmatmul.mubr.f32.gmra.mrb[0].mxu0 %v211
  %v299 = vpop.f32.mrb[0].mxu0
  %v300 = vadd.f32 0.0, %v299
  %v301 = vpop.f32.mrb[0].mxu0
  %302 = vdwg.mxu0
  %v304 = vlaneseq
  %v305 = vshrl.u32 %v304, 7
  %v306 = vsub.s32 0, %v305
  %v307 = vrot.slane %v209, %v306
  %v309 = vadd.f32 %v307, %v295
  %v310 = vadd.f32 %v307, %v300
  %v311 = vrsqrt.pop %v309
  %v312 = vrsqrt.pop %v310
  %v313 = vmul.f32 %v203, %v311
  %v314 = vmul.f32 %v206, %v312
  %315 = vst [vmem:[%s5] sm:$0xff] %v313
  %316 = vst [vmem:[%s5 + $0x8] sm:$0xff] %v314
  // Predicated region
  $region22: #{temporal_prior_encoder.6} parent=0 // pred_check
    _
  $region23: #{temporal_prior_encoder.6} parent=0 // pred_check_branch
    %318 = sbr.rel (0) target = $region25
  $region24: #{temporal_prior_encoder.6} parent=0 // pred_region
    _
  $region25: #{temporal_prior_encoder.6} parent=0 // pred_fallthru
    _
  // Predicated region
  $region26: #{temporal_prior_encoder.6} parent=0 // pred_check
    _
  $region27: #{temporal_prior_encoder.6} parent=0 // pred_check_branch
    %320 = sbr.rel (0) target = $region29
  $region28: #{temporal_prior_encoder.6} parent=0 // pred_region
    _
  $region29: #{temporal_prior_encoder.6} parent=0 // pred_fallthru
    _

// kernel: temporal_prior_encoder.7
$region0: #{temporal_prior_encoder.7}
  #allocation0 [shape = 'u32[]', space=smem, size = 0x4, offset = 0x4, fixed_abs, tag = 'smem constant byte address 0x4 - core index']
  #allocation1 [shape = 'u32[144,128]{1,0:T(1,128)}', space=vmem, size = 0x12000, scoped, tag = 'internal scratch']
  %s0 = inlined_call_operand.vmem [shape: bf16[16,256], index: 0, kind: input, shape index: {}]
  %s1 = inlined_call_operand.vmem [shape: bf16[256,128], index: 1, kind: input, shape index: {}]
  %s2 = inlined_call_operand.vmem [shape: f32[1,128], index: 2, kind: input, shape index: {}]
  %s3 = inlined_call_operand.vmem [shape: f32[16,128], index: 3, kind: output, shape index: {}]
  %s4 = sld [smem:[#allocation0]]
  $region22: #{temporal_prior_encoder.7} parent=0
    _
  %s6 = ssub.s32 1, %s4
  %s7 = scalar_select 0, %s6, %s4
  // Predicated region
  $region2: #{temporal_prior_encoder.7} parent=0 // pred_check
    _
  $region3: #{temporal_prior_encoder.7} parent=0 // pred_check_branch
    %9 = sbr.rel (0) target = $region5
  $region4: #{temporal_prior_encoder.7} parent=0 // pred_region
    _
  $region5: #{temporal_prior_encoder.7} parent=0 // pred_fallthru
    _
  // Predicated region
  $region6: #{temporal_prior_encoder.7} parent=0 // pred_check
    _
  $region7: #{temporal_prior_encoder.7} parent=0 // pred_check_branch
    %11 = sbr.rel (0) target = $region9
  $region8: #{temporal_prior_encoder.7} parent=0 // pred_region
    _
  $region9: #{temporal_prior_encoder.7} parent=0 // pred_fallthru
    _
  // Predicated region
  $region10: #{temporal_prior_encoder.7} parent=0 // pred_check
    _
  $region11: #{temporal_prior_encoder.7} parent=0 // pred_check_branch
    %13 = sbr.rel (0) target = $region13
  $region12: #{temporal_prior_encoder.7} parent=0 // pred_region
    _
  $region13: #{temporal_prior_encoder.7} parent=0 // pred_fallthru
    _
  %v15 = vld [vmem:[%s0] sm:$0xff]
  %v16 = vld [vmem:[%s0 + $0x8] sm:$0xff]
  %v17 = vld [vmem:[%s1] sm:$0xf]
  %v18 = vld [vmem:[%s1 + $0x4] sm:$0xf]
  %v19 = vld [vmem:[%s1 + $0x8] sm:$0xf]
  %v20 = vld [vmem:[%s1 + $0xc] sm:$0xf]
  %v21 = vld [vmem:[%s1 + $0x10] sm:$0xf]
  %v22 = vld [vmem:[%s1 + $0x14] sm:$0xf]
  %v23 = vld [vmem:[%s1 + $0x18] sm:$0xf]
  %v24 = vld [vmem:[%s1 + $0x1c] sm:$0xf]
  %v25 = vld [vmem:[%s1 + $0x20] sm:$0xf]
  %v26 = vld [vmem:[%s1 + $0x24] sm:$0xf]
  %v27 = vld [vmem:[%s1 + $0x28] sm:$0xf]
  %v28 = vld [vmem:[%s1 + $0x2c] sm:$0xf]
  %v29 = vld [vmem:[%s1 + $0x30] sm:$0xf]
  %v30 = vld [vmem:[%s1 + $0x34] sm:$0xf]
  %v31 = vld [vmem:[%s1 + $0x38] sm:$0xf]
  %v32 = vld [vmem:[%s1 + $0x3c] sm:$0xf]
  %v33 = vld [vmem:[%s1 + $0x40] sm:$0xf]
  %v34 = vld [vmem:[%s1 + $0x44] sm:$0xf]
  %v35 = vld [vmem:[%s1 + $0x48] sm:$0xf]
  %v36 = vld [vmem:[%s1 + $0x4c] sm:$0xf]
  %v37 = vld [vmem:[%s1 + $0x50] sm:$0xf]
  %v38 = vld [vmem:[%s1 + $0x54] sm:$0xf]
  %v39 = vld [vmem:[%s1 + $0x58] sm:$0xf]
  %v40 = vld [vmem:[%s1 + $0x5c] sm:$0xf]
  %v41 = vld [vmem:[%s1 + $0x60] sm:$0xf]
  %v42 = vld [vmem:[%s1 + $0x64] sm:$0xf]
  %v43 = vld [vmem:[%s1 + $0x68] sm:$0xf]
  %v44 = vld [vmem:[%s1 + $0x6c] sm:$0xf]
  %v45 = vld [vmem:[%s1 + $0x70] sm:$0xf]
  %v46 = vld [vmem:[%s1 + $0x74] sm:$0xf]
  %v47 = vld [vmem:[%s1 + $0x78] sm:$0xf]
  %v48 = vld [vmem:[%s1 + $0x7c] sm:$0xf]
  %v49 = vld [vmem:[%s2] sm:$0x1]
  %v51 = vlaneseq
  %v52 = vshrl.u32 %v51, 7
  %v53 = vsub.s32 0, %v52
  %v54 = vrot.slane %v49, %v53
  %v58 = vunpack.c.l.b16 %v15
  %v59 = vunpack.c.h.b16 %v15
  %v60 = vunpack.c.l.b16 %v16
  %v61 = vunpack.c.h.b16 %v16
  %v62 = vpack.c.b16 %v60, %v58
  %v63 = vpack.c.b16 %v61, %v59
  %v98 = vunpack.c.l.b16 %v17
  %v99 = vunpack.c.l.b16 %v18
  %v100 = vunpack.c.l.b16 %v19
  %v101 = vunpack.c.l.b16 %v20
  %v102 = vunpack.c.l.b16 %v21
  %v103 = vunpack.c.l.b16 %v22
  %v104 = vunpack.c.l.b16 %v23
  %v105 = vunpack.c.l.b16 %v24
  %v106 = vunpack.c.l.b16 %v25
  %v107 = vunpack.c.l.b16 %v26
  %v108 = vunpack.c.l.b16 %v27
  %v109 = vunpack.c.l.b16 %v28
  %v110 = vunpack.c.l.b16 %v29
  %v111 = vunpack.c.l.b16 %v30
  %v112 = vunpack.c.l.b16 %v31
  %v113 = vunpack.c.l.b16 %v32
  %v114 = vunpack.c.l.b16 %v33
  %v115 = vunpack.c.l.b16 %v34
  %v116 = vunpack.c.l.b16 %v35
  %v117 = vunpack.c.l.b16 %v36
  %v118 = vunpack.c.l.b16 %v37
  %v119 = vunpack.c.l.b16 %v38
  %v120 = vunpack.c.l.b16 %v39
  %v121 = vunpack.c.l.b16 %v40
  %v122 = vunpack.c.l.b16 %v41
  %v123 = vunpack.c.l.b16 %v42
  %v124 = vunpack.c.l.b16 %v43
  %v125 = vunpack.c.l.b16 %v44
  %v126 = vunpack.c.l.b16 %v45
  %v127 = vunpack.c.l.b16 %v46
  %v128 = vunpack.c.l.b16 %v47
  %v129 = vunpack.c.l.b16 %v48
  %v130 = vpack.c.b16 %v99, %v98
  %v131 = vpack.c.b16 %v101, %v100
  %v132 = vpack.c.b16 %v103, %v102
  %v133 = vpack.c.b16 %v105, %v104
  %v134 = vpack.c.b16 %v107, %v106
  %v135 = vpack.c.b16 %v109, %v108
  %v136 = vpack.c.b16 %v111, %v110
  %v137 = vpack.c.b16 %v113, %v112
  %v138 = vpack.c.b16 %v115, %v114
  %v139 = vpack.c.b16 %v117, %v116
  %v140 = vpack.c.b16 %v119, %v118
  %v141 = vpack.c.b16 %v121, %v120
  %v142 = vpack.c.b16 %v123, %v122
  %v143 = vpack.c.b16 %v125, %v124
  %v144 = vpack.c.b16 %v127, %v126
  %v145 = vpack.c.b16 %v129, %v128
  %162 = vmatprep.subr.bf16.mxu0 0
  %163 = vmatpush1.bf16.msra.mxu0 %v130
  %164 = vmatprep.subr.bf16.mxu0 0
  %165 = vmatpush1.bf16.msra.mxu0 %v131
  %166 = vmatprep.subr.bf16.mxu0 0
  %167 = vmatpush1.bf16.msra.mxu0 %v132
  %168 = vmatprep.subr.bf16.mxu0 0
  %169 = vmatpush1.bf16.msra.mxu0 %v133
  %170 = vmatprep.subr.bf16.mxu0 0
  %171 = vmatpush1.bf16.msra.mxu0 %v134
  %172 = vmatprep.subr.bf16.mxu0 0
  %173 = vmatpush1.bf16.msra.mxu0 %v135
  %174 = vmatprep.subr.bf16.mxu0 0
  %175 = vmatpush1.bf16.msra.mxu0 %v136
  %176 = vmatprep.subr.bf16.mxu0 0
  %177 = vmatpush1.bf16.msra.mxu0 %v137
  %178 = vmatprep.subr.bf16.mxu0 0
  %179 = vmatpush1.bf16.msra.mxu0 %v138
  %180 = vmatprep.subr.bf16.mxu0 0
  %181 = vmatpush1.bf16.msra.mxu0 %v139
  %182 = vmatprep.subr.bf16.mxu0 0
  %183 = vmatpush1.bf16.msra.mxu0 %v140
  %184 = vmatprep.subr.bf16.mxu0 0
  %185 = vmatpush1.bf16.msra.mxu0 %v141
  %186 = vmatprep.subr.bf16.mxu0 0
  %187 = vmatpush1.bf16.msra.mxu0 %v142
  %188 = vmatprep.subr.bf16.mxu0 0
  %189 = vmatpush1.bf16.msra.mxu0 %v143
  %190 = vmatprep.subr.bf16.mxu0 0
  %191 = vmatpush1.bf16.msra.mxu0 %v144
  %192 = vmatprep.subr.bf16.mxu0 0
  %193 = vmatpush1.bf16.msra.mxu0 %v145
  %194 = vmatprep.mubr.bf16.mxu0 %v63
  %195 = vmatmul.mubr.bf16.gmra.mrb[0].mxu0 %v62
  %v196 = vpop.f32.mrb[0].mxu0
  %v197 = vadd.f32 %v54, %v196
  %v198 = vpop.f32.mrb[0].mxu0
  %v199 = vpop.f32.mrb[0].mxu0
  %v200 = vadd.f32 %v54, %v199
  %v201 = vpop.f32.mrb[0].mxu0
  %202 = vdwg.mxu0
  %203 = vst [vmem:[%s3] sm:$0xff] %v197
  %204 = vst [vmem:[%s3 + $0x8] sm:$0xff] %v200
  // Predicated region
  $region14: #{temporal_prior_encoder.7} parent=0 // pred_check
    _
  $region15: #{temporal_prior_encoder.7} parent=0 // pred_check_branch
    %206 = sbr.rel (0) target = $region17
  $region16: #{temporal_prior_encoder.7} parent=0 // pred_region
    _
  $region17: #{temporal_prior_encoder.7} parent=0 // pred_fallthru
    _
  // Predicated region
  $region18: #{temporal_prior_encoder.7} parent=0 // pred_check
    _
  $region19: #{temporal_prior_encoder.7} parent=0 // pred_check_branch
    %208 = sbr.rel (0) target = $region21
  $region20: #{temporal_prior_encoder.7} parent=0 // pred_region
    _
  $region21: #{temporal_prior_encoder.7} parent=0 // pred_fallthru
    _

</llo_original>
